<compile_context>
chip_gen: v7x
topology: tpu7x:2x2x1
jax: 0.10.0
libtpu: 0.0.40
codegen_flags: <defaults>
</compile_context>

<pallas_src>
from functools import partial

import jax
import jax.numpy as jnp
from jax import lax
from jax.experimental import pallas as pl
from jax.experimental.pallas import tpu as pltpu

# ---- tiny synthetic causal-LM config (stand-in for the HF checkpoint) ------
S_MAX = 16    # max sequence length (prompt + generated tokens)
D     = 32    # hidden size
H     = 4     # attention heads
HD    = D // H
F     = 64    # MLP hidden size
V     = 64    # vocab size
V_PAD = 128   # lane-dense LM-head output width (padded vocab)
L     = 2     # number of transformer layers


def _layernorm(x, scale, bias, eps=1e-5):
    mu = jnp.mean(x, axis=-1, keepdims=True)
    var = jnp.mean((x - mu) ** 2, axis=-1, keepdims=True)
    return (x - mu) * lax.rsqrt(var + eps) * scale + bias


def _gelu(x):
    # tanh-approx GELU (EUP-friendly)
    return 0.5 * x * (1.0 + jnp.tanh(0.7978845608028654 * (x + 0.044715 * x * x * x)))


def transformer_kernel(x_ref, wqkv_ref, wo_ref, w1_ref, w2_ref,
                       ln1s_ref, ln1b_ref, ln2s_ref, ln2b_ref,
                       lnfs_ref, lnfb_ref, head_ref, out_ref):
    """Full decoder stack for one (padded) sequence; writes (S_MAX, V_PAD) logits."""
    bf16 = jnp.bfloat16
    h = x_ref[...]                                     # (S, D) f32 token+pos embeddings

    # Constant causal mask built in-kernel (no HBM input / DMA for it).
    row = lax.broadcasted_iota(jnp.int32, (S_MAX, S_MAX), 0)
    col = lax.broadcasted_iota(jnp.int32, (S_MAX, S_MAX), 1)
    mask = jnp.where(col <= row, 0.0, -1e9).astype(jnp.float32)

    for l in range(L):                                 # small static layer count -> unrolled
        # --- multi-head causal self-attention (pre-LN) ---
        hn = _layernorm(h, ln1s_ref[l], ln1b_ref[l])
        qkv = jnp.dot(hn.astype(bf16), wqkv_ref[l],
                      preferred_element_type=jnp.float32)        # (S, 3D) f32
        q = qkv[:, 0:D]                                # 1/sqrt(HD) folded into wqkv at init
        k = qkv[:, D:2 * D]
        v = qkv[:, 2 * D:3 * D]

        ctx_heads = []
        for hh in range(H):
            qh = q[:, hh * HD:(hh + 1) * HD]
            kh = k[:, hh * HD:(hh + 1) * HD]
            vh = v[:, hh * HD:(hh + 1) * HD]
            # transpose expressed as contracting-dim choice, not a materialized .T
            s = lax.dot_general(qh.astype(bf16), kh.astype(bf16),
                                dimension_numbers=(((1,), (1,)), ((), ())),
                                preferred_element_type=jnp.float32)   # (S, S)
            s = s + mask
            s = s - jnp.max(s, axis=-1, keepdims=True)
            p = jnp.exp(s)
            p = p * pl.reciprocal(jnp.sum(p, axis=-1, keepdims=True), approx=True)
            ctx_heads.append(jnp.dot(p.astype(bf16), vh.astype(bf16),
                                     preferred_element_type=jnp.float32))   # (S, HD)
        # heads packed along the lane axis -> ONE full-width output projection
        ctx = jnp.concatenate(ctx_heads, axis=-1)      # (S, D)
        h = h + jnp.dot(ctx.astype(bf16), wo_ref[l],
                        preferred_element_type=jnp.float32)

        # --- MLP (pre-LN) ---
        hn2 = _layernorm(h, ln2s_ref[l], ln2b_ref[l])
        inner = _gelu(jnp.dot(hn2.astype(bf16), w1_ref[l],
                              preferred_element_type=jnp.float32))
        h = h + jnp.dot(inner.astype(bf16), w2_ref[l],
                        preferred_element_type=jnp.float32)

    # --- final LN + LM head (lane-dense V_PAD=128 output) ---
    hf = _layernorm(h, lnfs_ref[...], lnfb_ref[...])
    out_ref[...] = jnp.dot(hf.astype(bf16), head_ref[...],
                           preferred_element_type=jnp.float32)


def transformer_forward(x_emb, params):
    vmem = pl.BlockSpec(memory_space=pltpu.MemorySpace.VMEM)
    args = (x_emb,) + params
    return pl.pallas_call(
        transformer_kernel,
        out_shape=jax.ShapeDtypeStruct((S_MAX, V_PAD), jnp.float32),
        in_specs=[vmem] * len(args),
        out_specs=vmem,
    )(*args)


def init_params(key):
    ks = jax.random.split(key, 8)
    scale = 0.02
    bf16 = jnp.bfloat16
    wqkv = scale * jax.random.normal(ks[0], (L, D, 3 * D), jnp.float32)
    # fold the 1/sqrt(HD) attention scale into the Q projection columns
    wqkv = wqkv.at[:, :, 0:D].multiply(1.0 / (HD ** 0.5))
    wo   = scale * jax.random.normal(ks[1], (L, D, D), jnp.float32)
    w1   = scale * jax.random.normal(ks[2], (L, D, F), jnp.float32)
    w2   = scale * jax.random.normal(ks[3], (L, F, D), jnp.float32)
    head = scale * jax.random.normal(ks[4], (D, V), jnp.float32)
    head = jnp.pad(head, ((0, 0), (0, V_PAD - V)))     # lane-dense LM head output
    ln1s = jnp.ones((L, 1, D), jnp.float32)
    ln1b = jnp.zeros((L, 1, D), jnp.float32)
    ln2s = jnp.ones((L, 1, D), jnp.float32)
    ln2b = jnp.zeros((L, 1, D), jnp.float32)
    lnfs = jnp.ones((1, D), jnp.float32)
    lnfb = jnp.zeros((1, D), jnp.float32)
    tok_emb = scale * jax.random.normal(ks[5], (V, D), jnp.float32)
    pos_emb = scale * jax.random.normal(ks[6], (S_MAX, D), jnp.float32)
    # matmul operands stored bf16 (MXU-native on v6e/v7x); LN params stay f32
    params = (wqkv.astype(bf16), wo.astype(bf16), w1.astype(bf16), w2.astype(bf16),
              ln1s, ln1b, ln2s, ln2b, lnfs, lnfb, head.astype(bf16))
    return params, tok_emb, pos_emb


@partial(jax.jit, static_argnames=("max_tokens",))
def generate_on_device(ids, prompt_len, params, tok_emb, pos_emb, key,
                       max_tokens=4, temperature=0.5, frequency_penalty=1.2):
    """Mirrors HuggingFaceLLM.forward generation: sample `max_tokens` new tokens
    with temperature + repetition penalty.  The whole decode loop runs on-device
    inside one jit (no per-token dispatch or host sync).
    Note: recomputes the full (padded) sequence each step; a KV-cache +
    single-row decode kernel (input_output_aliases) would cut per-token FLOPs
    by S_MAX but is unnecessary at these toy shapes."""
    # TODO(synk): tokenizer / chat-template / decode-to-string have no Pallas equivalent.

    def step(i, carry):
        ids, key, _ = carry
        cur_len = prompt_len + i
        x = tok_emb[ids] + pos_emb                       # (S_MAX, D)
        logits = transformer_forward(x, params)          # (S_MAX, V_PAD)  <- Pallas
        nxt_logits = logits[cur_len - 1][:V]             # next-token logits (real vocab)

        # HF-style repetition penalty on already-seen tokens
        valid = (jnp.arange(S_MAX) < cur_len).astype(jnp.int32)
        counts = jnp.zeros((V,), jnp.int32).at[ids].add(valid)
        seen = counts > 0
        penalized = jnp.where(nxt_logits > 0,
                              nxt_logits / frequency_penalty,
                              nxt_logits * frequency_penalty)
        nxt_logits = jnp.where(seen, penalized, nxt_logits)

        # temperature sampling (do_sample=True)
        key, sub = jax.random.split(key)
        tok = jax.random.categorical(sub, nxt_logits / temperature).astype(jnp.int32)
        ids = ids.at[cur_len].set(tok)
        return ids, key, logits

    init_logits = jnp.zeros((S_MAX, V_PAD), jnp.float32)
    ids, key, logits = lax.fori_loop(0, max_tokens, step, (ids, key, init_logits))
    return ids, logits[:, :V]


if __name__ == "__main__":
    root = jax.random.PRNGKey(0)
    pkey, skey, tkey = jax.random.split(root, 3)

    params, tok_emb, pos_emb = init_params(pkey)

    # deterministic synthetic "tokenized prompt" of length 8
    prompt_len = 8
    prompt_ids = jax.random.randint(tkey, (prompt_len,), 0, V, dtype=jnp.int32)
    ids0 = jnp.zeros((S_MAX,), jnp.int32).at[:prompt_len].set(prompt_ids)

    max_tokens = 4
    ids, logits = generate_on_device(ids0, jnp.int32(prompt_len), params, tok_emb,
                                     pos_emb, skey, max_tokens=max_tokens)
    jax.block_until_ready((ids, logits))

    new_tokens = [int(t) for t in ids[prompt_len:prompt_len + max_tokens]]
    assert len(new_tokens) == max_tokens
    assert all(0 <= t < V for t in new_tokens)
    assert logits.shape == (S_MAX, V)
    print("KERNEL_OK")
</pallas_src>

<mosaic_0001>
module attributes {stable_mosaic.version = 11 : i64} {
  func.func private @main(%arg0: i32) attributes {dimension_semantics = [#tpu.dimension_semantics<core_parallel>], iteration_bounds = array<i64: 2>, tpu.core_type = #tpu.core_type<sc_scalar_subcore>, window_params = []} {
    return
  }
}

module attributes {stable_mosaic.version = 11 : i64} {
  func.func private @main(%arg0: i32) attributes {dimension_semantics = [#tpu.dimension_semantics<core_parallel>], iteration_bounds = array<i64: 2>, tpu.core_type = #tpu.core_type<sc_scalar_subcore>, window_params = []} {
    return
  }
}

module attributes {stable_mosaic.version = 11 : i64} {
  func.func @transformer_kernel(%arg0: memref<16x32xf32, #tpu.memory_space<vmem>>, %arg1: memref<2x32x96xbf16, #tpu.memory_space<vmem>>, %arg2: memref<2x32x32xbf16, #tpu.memory_space<vmem>>, %arg3: memref<2x32x64xbf16, #tpu.memory_space<vmem>>, %arg4: memref<2x64x32xbf16, #tpu.memory_space<vmem>>, %arg5: memref<2x1x32xf32, #tpu.memory_space<vmem>>, %arg6: memref<2x1x32xf32, #tpu.memory_space<vmem>>, %arg7: memref<2x1x32xf32, #tpu.memory_space<vmem>>, %arg8: memref<2x1x32xf32, #tpu.memory_space<vmem>>, %arg9: memref<1x32xf32, #tpu.memory_space<vmem>>, %arg10: memref<1x32xf32, #tpu.memory_space<vmem>>, %arg11: memref<32x128xbf16, #tpu.memory_space<vmem>>, %arg12: memref<16x128xf32, #tpu.memory_space<vmem>>) attributes {dimension_semantics = [], scalar_prefetch = 0 : i64, scratch_operands = 0 : i64, tpu.core_type = #tpu.core_type<tc>} {
    %c0 = arith.constant 0 : index
    %c0_0 = arith.constant 0 : index
    %0 = vector.load %arg0[%c0, %c0_0] : memref<16x32xf32, #tpu.memory_space<vmem>>, vector<16x32xf32>
    %1 = tpu.iota {dimensions = array<i32: 0>} : vector<16x16xi32>
    %2 = tpu.iota {dimensions = array<i32: 1>} : vector<16x16xi32>
    %3 = arith.cmpi sle, %2, %1 : vector<16x16xi32>
    %cst = arith.constant 0.000000e+00 : f32
    %cst_1 = arith.constant -1.000000e+09 : f32
    %4 = vector.broadcast %cst : f32 to vector<16x16xf32>
    %5 = vector.broadcast %cst_1 : f32 to vector<16x16xf32>
    %6 = arith.select %3, %4, %5 : vector<16x16xi1>, vector<16x16xf32>
    %c0_2 = arith.constant 0 : index
    %c0_3 = arith.constant 0 : index
    %c0_4 = arith.constant 0 : index
    %7 = vector.load %arg5[%c0_2, %c0_3, %c0_4] : memref<2x1x32xf32, #tpu.memory_space<vmem>>, vector<1x1x32xf32>
    %8 = vector.shape_cast %7 : vector<1x1x32xf32> to vector<1x32xf32>
    %c0_5 = arith.constant 0 : index
    %c0_6 = arith.constant 0 : index
    %c0_7 = arith.constant 0 : index
    %9 = vector.load %arg6[%c0_5, %c0_6, %c0_7] : memref<2x1x32xf32, #tpu.memory_space<vmem>>, vector<1x1x32xf32>
    %10 = vector.shape_cast %9 : vector<1x1x32xf32> to vector<1x32xf32>
    %cst_8 = arith.constant dense<0.000000e+00> : vector<16xf32>
    %11 = vector.multi_reduction <add>, %0, %cst_8 [1] : vector<16x32xf32> to vector<16xf32>
    %12 = vector.shape_cast %11 : vector<16xf32> to vector<16x1xf32>
    %cst_9 = arith.constant 3.200000e+01 : f32
    %13 = vector.broadcast %cst_9 : f32 to vector<16x1xf32>
    %14 = arith.divf %12, %13 : vector<16x1xf32>
    %15 = vector.broadcast %14 : vector<16x1xf32> to vector<16x32xf32>
    %16 = arith.subf %0, %15 : vector<16x32xf32>
    %17 = arith.mulf %16, %16 : vector<16x32xf32>
    %cst_10 = arith.constant dense<0.000000e+00> : vector<16xf32>
    %18 = vector.multi_reduction <add>, %17, %cst_10 [1] : vector<16x32xf32> to vector<16xf32>
    %19 = vector.shape_cast %18 : vector<16xf32> to vector<16x1xf32>
    %cst_11 = arith.constant 3.200000e+01 : f32
    %20 = vector.broadcast %cst_11 : f32 to vector<16x1xf32>
    %21 = arith.divf %19, %20 : vector<16x1xf32>
    %22 = vector.broadcast %14 : vector<16x1xf32> to vector<16x32xf32>
    %23 = arith.subf %0, %22 : vector<16x32xf32>
    %cst_12 = arith.constant 9.99999974E-6 : f32
    %24 = vector.broadcast %cst_12 : f32 to vector<16x1xf32>
    %25 = arith.addf %21, %24 : vector<16x1xf32>
    %26 = math.rsqrt %25 : vector<16x1xf32>
    %27 = vector.broadcast %26 : vector<16x1xf32> to vector<16x32xf32>
    %28 = arith.mulf %23, %27 : vector<16x32xf32>
    %29 = vector.broadcast %8 : vector<1x32xf32> to vector<16x32xf32>
    %30 = arith.mulf %28, %29 : vector<16x32xf32>
    %31 = vector.broadcast %10 : vector<1x32xf32> to vector<16x32xf32>
    %32 = arith.addf %30, %31 : vector<16x32xf32>
    %33 = arith.truncf %32 : vector<16x32xf32> to vector<16x32xbf16>
    %c0_13 = arith.constant 0 : index
    %c0_14 = arith.constant 0 : index
    %c0_15 = arith.constant 0 : index
    %34 = vector.load %arg1[%c0_13, %c0_14, %c0_15] : memref<2x32x96xbf16, #tpu.memory_space<vmem>>, vector<1x32x96xbf16>
    %35 = vector.shape_cast %34 : vector<1x32x96xbf16> to vector<32x96xbf16>
    %cst_16 = arith.constant dense<0.000000e+00> : vector<16x96xf32>
    %36 = tpu.matmul %33, %35, %cst_16 {dimension_numbers = #tpu.dot_dimension_numbers<[1], [0], [0], [1], [0, 0, 1, 1], [], []>} : vector<16x32xbf16>, vector<32x96xbf16>, vector<16x96xf32> -> vector<16x96xf32>
    %37 = vector.extract_strided_slice %36 {offsets = [0, 0], sizes = [16, 32], strides = [1, 1]} : vector<16x96xf32> to vector<16x32xf32>
    %38 = vector.extract_strided_slice %36 {offsets = [0, 32], sizes = [16, 32], strides = [1, 1]} : vector<16x96xf32> to vector<16x32xf32>
    %39 = vector.extract_strided_slice %36 {offsets = [0, 64], sizes = [16, 32], strides = [1, 1]} : vector<16x96xf32> to vector<16x32xf32>
    %40 = vector.extract_strided_slice %37 {offsets = [0, 0], sizes = [16, 8], strides = [1, 1]} : vector<16x32xf32> to vector<16x8xf32>
    %41 = vector.extract_strided_slice %38 {offsets = [0, 0], sizes = [16, 8], strides = [1, 1]} : vector<16x32xf32> to vector<16x8xf32>
    %42 = vector.extract_strided_slice %39 {offsets = [0, 0], sizes = [16, 8], strides = [1, 1]} : vector<16x32xf32> to vector<16x8xf32>
    %43 = arith.truncf %40 : vector<16x8xf32> to vector<16x8xbf16>
    %44 = arith.truncf %41 : vector<16x8xf32> to vector<16x8xbf16>
    %cst_17 = arith.constant dense<0.000000e+00> : vector<16x16xf32>
    %45 = tpu.matmul %43, %44, %cst_17 {dimension_numbers = #tpu.dot_dimension_numbers<[1], [1], [0], [0], [0, 0, 1, 0], [], []>} : vector<16x8xbf16>, vector<16x8xbf16>, vector<16x16xf32> -> vector<16x16xf32>
    %46 = arith.addf %45, %6 : vector<16x16xf32>
    %cst_18 = arith.constant dense<0xFF800000> : vector<16xf32>
    %47 = vector.multi_reduction <maximumf>, %46, %cst_18 [1] : vector<16x16xf32> to vector<16xf32>
    %48 = vector.shape_cast %47 : vector<16xf32> to vector<16x1xf32>
    %49 = vector.broadcast %48 : vector<16x1xf32> to vector<16x16xf32>
    %50 = arith.subf %46, %49 : vector<16x16xf32>
    %51 = math.exp %50 : vector<16x16xf32>
    %cst_19 = arith.constant dense<0.000000e+00> : vector<16xf32>
    %52 = vector.multi_reduction <add>, %51, %cst_19 [1] : vector<16x16xf32> to vector<16xf32>
    %53 = vector.shape_cast %52 : vector<16xf32> to vector<16x1xf32>
    %54 = tpu.reciprocal %53 {approx = true} : vector<16x1xf32> -> vector<16x1xf32>
    %55 = vector.broadcast %54 : vector<16x1xf32> to vector<16x16xf32>
    %56 = arith.mulf %51, %55 : vector<16x16xf32>
    %57 = arith.truncf %56 : vector<16x16xf32> to vector<16x16xbf16>
    %58 = arith.truncf %42 : vector<16x8xf32> to vector<16x8xbf16>
    %cst_20 = arith.constant dense<0.000000e+00> : vector<16x8xf32>
    %59 = tpu.matmul %57, %58, %cst_20 {dimension_numbers = #tpu.dot_dimension_numbers<[1], [0], [0], [1], [0, 0, 1, 1], [], []>} : vector<16x16xbf16>, vector<16x8xbf16>, vector<16x8xf32> -> vector<16x8xf32>
    %60 = vector.extract_strided_slice %37 {offsets = [0, 8], sizes = [16, 8], strides = [1, 1]} : vector<16x32xf32> to vector<16x8xf32>
    %61 = vector.extract_strided_slice %38 {offsets = [0, 8], sizes = [16, 8], strides = [1, 1]} : vector<16x32xf32> to vector<16x8xf32>
    %62 = vector.extract_strided_slice %39 {offsets = [0, 8], sizes = [16, 8], strides = [1, 1]} : vector<16x32xf32> to vector<16x8xf32>
    %63 = arith.truncf %60 : vector<16x8xf32> to vector<16x8xbf16>
    %64 = arith.truncf %61 : vector<16x8xf32> to vector<16x8xbf16>
    %cst_21 = arith.constant dense<0.000000e+00> : vector<16x16xf32>
    %65 = tpu.matmul %63, %64, %cst_21 {dimension_numbers = #tpu.dot_dimension_numbers<[1], [1], [0], [0], [0, 0, 1, 0], [], []>} : vector<16x8xbf16>, vector<16x8xbf16>, vector<16x16xf32> -> vector<16x16xf32>
    %66 = arith.addf %65, %6 : vector<16x16xf32>
    %cst_22 = arith.constant dense<0xFF800000> : vector<16xf32>
    %67 = vector.multi_reduction <maximumf>, %66, %cst_22 [1] : vector<16x16xf32> to vector<16xf32>
    %68 = vector.shape_cast %67 : vector<16xf32> to vector<16x1xf32>
    %69 = vector.broadcast %68 : vector<16x1xf32> to vector<16x16xf32>
    %70 = arith.subf %66, %69 : vector<16x16xf32>
    %71 = math.exp %70 : vector<16x16xf32>
    %cst_23 = arith.constant dense<0.000000e+00> : vector<16xf32>
    %72 = vector.multi_reduction <add>, %71, %cst_23 [1] : vector<16x16xf32> to vector<16xf32>
    %73 = vector.shape_cast %72 : vector<16xf32> to vector<16x1xf32>
    %74 = tpu.reciprocal %73 {approx = true} : vector<16x1xf32> -> vector<16x1xf32>
    %75 = vector.broadcast %74 : vector<16x1xf32> to vector<16x16xf32>
    %76 = arith.mulf %71, %75 : vector<16x16xf32>
    %77 = arith.truncf %76 : vector<16x16xf32> to vector<16x16xbf16>
    %78 = arith.truncf %62 : vector<16x8xf32> to vector<16x8xbf16>
    %cst_24 = arith.constant dense<0.000000e+00> : vector<16x8xf32>
    %79 = tpu.matmul %77, %78, %cst_24 {dimension_numbers = #tpu.dot_dimension_numbers<[1], [0], [0], [1], [0, 0, 1, 1], [], []>} : vector<16x16xbf16>, vector<16x8xbf16>, vector<16x8xf32> -> vector<16x8xf32>
    %80 = vector.extract_strided_slice %37 {offsets = [0, 16], sizes = [16, 8], strides = [1, 1]} : vector<16x32xf32> to vector<16x8xf32>
    %81 = vector.extract_strided_slice %38 {offsets = [0, 16], sizes = [16, 8], strides = [1, 1]} : vector<16x32xf32> to vector<16x8xf32>
    %82 = vector.extract_strided_slice %39 {offsets = [0, 16], sizes = [16, 8], strides = [1, 1]} : vector<16x32xf32> to vector<16x8xf32>
    %83 = arith.truncf %80 : vector<16x8xf32> to vector<16x8xbf16>
    %84 = arith.truncf %81 : vector<16x8xf32> to vector<16x8xbf16>
    %cst_25 = arith.constant dense<0.000000e+00> : vector<16x16xf32>
    %85 = tpu.matmul %83, %84, %cst_25 {dimension_numbers = #tpu.dot_dimension_numbers<[1], [1], [0], [0], [0, 0, 1, 0], [], []>} : vector<16x8xbf16>, vector<16x8xbf16>, vector<16x16xf32> -> vector<16x16xf32>
    %86 = arith.addf %85, %6 : vector<16x16xf32>
    %cst_26 = arith.constant dense<0xFF800000> : vector<16xf32>
    %87 = vector.multi_reduction <maximumf>, %86, %cst_26 [1] : vector<16x16xf32> to vector<16xf32>
    %88 = vector.shape_cast %87 : vector<16xf32> to vector<16x1xf32>
    %89 = vector.broadcast %88 : vector<16x1xf32> to vector<16x16xf32>
    %90 = arith.subf %86, %89 : vector<16x16xf32>
    %91 = math.exp %90 : vector<16x16xf32>
    %cst_27 = arith.constant dense<0.000000e+00> : vector<16xf32>
    %92 = vector.multi_reduction <add>, %91, %cst_27 [1] : vector<16x16xf32> to vector<16xf32>
    %93 = vector.shape_cast %92 : vector<16xf32> to vector<16x1xf32>
    %94 = tpu.reciprocal %93 {approx = true} : vector<16x1xf32> -> vector<16x1xf32>
    %95 = vector.broadcast %94 : vector<16x1xf32> to vector<16x16xf32>
    %96 = arith.mulf %91, %95 : vector<16x16xf32>
    %97 = arith.truncf %96 : vector<16x16xf32> to vector<16x16xbf16>
    %98 = arith.truncf %82 : vector<16x8xf32> to vector<16x8xbf16>
    %cst_28 = arith.constant dense<0.000000e+00> : vector<16x8xf32>
    %99 = tpu.matmul %97, %98, %cst_28 {dimension_numbers = #tpu.dot_dimension_numbers<[1], [0], [0], [1], [0, 0, 1, 1], [], []>} : vector<16x16xbf16>, vector<16x8xbf16>, vector<16x8xf32> -> vector<16x8xf32>
    %100 = vector.extract_strided_slice %37 {offsets = [0, 24], sizes = [16, 8], strides = [1, 1]} : vector<16x32xf32> to vector<16x8xf32>
    %101 = vector.extract_strided_slice %38 {offsets = [0, 24], sizes = [16, 8], strides = [1, 1]} : vector<16x32xf32> to vector<16x8xf32>
    %102 = vector.extract_strided_slice %39 {offsets = [0, 24], sizes = [16, 8], strides = [1, 1]} : vector<16x32xf32> to vector<16x8xf32>
    %103 = arith.truncf %100 : vector<16x8xf32> to vector<16x8xbf16>
    %104 = arith.truncf %101 : vector<16x8xf32> to vector<16x8xbf16>
    %cst_29 = arith.constant dense<0.000000e+00> : vector<16x16xf32>
    %105 = tpu.matmul %103, %104, %cst_29 {dimension_numbers = #tpu.dot_dimension_numbers<[1], [1], [0], [0], [0, 0, 1, 0], [], []>} : vector<16x8xbf16>, vector<16x8xbf16>, vector<16x16xf32> -> vector<16x16xf32>
    %106 = arith.addf %105, %6 : vector<16x16xf32>
    %cst_30 = arith.constant dense<0xFF800000> : vector<16xf32>
    %107 = vector.multi_reduction <maximumf>, %106, %cst_30 [1] : vector<16x16xf32> to vector<16xf32>
    %108 = vector.shape_cast %107 : vector<16xf32> to vector<16x1xf32>
    %109 = vector.broadcast %108 : vector<16x1xf32> to vector<16x16xf32>
    %110 = arith.subf %106, %109 : vector<16x16xf32>
    %111 = math.exp %110 : vector<16x16xf32>
    %cst_31 = arith.constant dense<0.000000e+00> : vector<16xf32>
    %112 = vector.multi_reduction <add>, %111, %cst_31 [1] : vector<16x16xf32> to vector<16xf32>
    %113 = vector.shape_cast %112 : vector<16xf32> to vector<16x1xf32>
    %114 = tpu.reciprocal %113 {approx = true} : vector<16x1xf32> -> vector<16x1xf32>
    %115 = vector.broadcast %114 : vector<16x1xf32> to vector<16x16xf32>
    %116 = arith.mulf %111, %115 : vector<16x16xf32>
    %117 = arith.truncf %116 : vector<16x16xf32> to vector<16x16xbf16>
    %118 = arith.truncf %102 : vector<16x8xf32> to vector<16x8xbf16>
    %cst_32 = arith.constant dense<0.000000e+00> : vector<16x8xf32>
    %119 = tpu.matmul %117, %118, %cst_32 {dimension_numbers = #tpu.dot_dimension_numbers<[1], [0], [0], [1], [0, 0, 1, 1], [], []>} : vector<16x16xbf16>, vector<16x8xbf16>, vector<16x8xf32> -> vector<16x8xf32>
    %120 = tpu.concatenate %59, %79, %99, %119 in 1 : vector<16x8xf32>, vector<16x8xf32>, vector<16x8xf32>, vector<16x8xf32> -> vector<16x32xf32>
    %121 = arith.truncf %120 : vector<16x32xf32> to vector<16x32xbf16>
    %c0_33 = arith.constant 0 : index
    %c0_34 = arith.constant 0 : index
    %c0_35 = arith.constant 0 : index
    %122 = vector.load %arg2[%c0_33, %c0_34, %c0_35] : memref<2x32x32xbf16, #tpu.memory_space<vmem>>, vector<1x32x32xbf16>
    %123 = vector.shape_cast %122 : vector<1x32x32xbf16> to vector<32x32xbf16>
    %cst_36 = arith.constant dense<0.000000e+00> : vector<16x32xf32>
    %124 = tpu.matmul %121, %123, %cst_36 {dimension_numbers = #tpu.dot_dimension_numbers<[1], [0], [0], [1], [0, 0, 1, 1], [], []>} : vector<16x32xbf16>, vector<32x32xbf16>, vector<16x32xf32> -> vector<16x32xf32>
    %125 = arith.addf %0, %124 : vector<16x32xf32>
    %c0_37 = arith.constant 0 : index
    %c0_38 = arith.constant 0 : index
    %c0_39 = arith.constant 0 : index
    %126 = vector.load %arg7[%c0_37, %c0_38, %c0_39] : memref<2x1x32xf32, #tpu.memory_space<vmem>>, vector<1x1x32xf32>
    %127 = vector.shape_cast %126 : vector<1x1x32xf32> to vector<1x32xf32>
    %c0_40 = arith.constant 0 : index
    %c0_41 = arith.constant 0 : index
    %c0_42 = arith.constant 0 : index
    %128 = vector.load %arg8[%c0_40, %c0_41, %c0_42] : memref<2x1x32xf32, #tpu.memory_space<vmem>>, vector<1x1x32xf32>
    %129 = vector.shape_cast %128 : vector<1x1x32xf32> to vector<1x32xf32>
    %cst_43 = arith.constant dense<0.000000e+00> : vector<16xf32>
    %130 = vector.multi_reduction <add>, %125, %cst_43 [1] : vector<16x32xf32> to vector<16xf32>
    %131 = vector.shape_cast %130 : vector<16xf32> to vector<16x1xf32>
    %cst_44 = arith.constant 3.200000e+01 : f32
    %132 = vector.broadcast %cst_44 : f32 to vector<16x1xf32>
    %133 = arith.divf %131, %132 : vector<16x1xf32>
    %134 = vector.broadcast %133 : vector<16x1xf32> to vector<16x32xf32>
    %135 = arith.subf %125, %134 : vector<16x32xf32>
    %136 = arith.mulf %135, %135 : vector<16x32xf32>
    %cst_45 = arith.constant dense<0.000000e+00> : vector<16xf32>
    %137 = vector.multi_reduction <add>, %136, %cst_45 [1] : vector<16x32xf32> to vector<16xf32>
    %138 = vector.shape_cast %137 : vector<16xf32> to vector<16x1xf32>
    %cst_46 = arith.constant 3.200000e+01 : f32
    %139 = vector.broadcast %cst_46 : f32 to vector<16x1xf32>
    %140 = arith.divf %138, %139 : vector<16x1xf32>
    %141 = vector.broadcast %133 : vector<16x1xf32> to vector<16x32xf32>
    %142 = arith.subf %125, %141 : vector<16x32xf32>
    %cst_47 = arith.constant 9.99999974E-6 : f32
    %143 = vector.broadcast %cst_47 : f32 to vector<16x1xf32>
    %144 = arith.addf %140, %143 : vector<16x1xf32>
    %145 = math.rsqrt %144 : vector<16x1xf32>
    %146 = vector.broadcast %145 : vector<16x1xf32> to vector<16x32xf32>
    %147 = arith.mulf %142, %146 : vector<16x32xf32>
    %148 = vector.broadcast %127 : vector<1x32xf32> to vector<16x32xf32>
    %149 = arith.mulf %147, %148 : vector<16x32xf32>
    %150 = vector.broadcast %129 : vector<1x32xf32> to vector<16x32xf32>
    %151 = arith.addf %149, %150 : vector<16x32xf32>
    %152 = arith.truncf %151 : vector<16x32xf32> to vector<16x32xbf16>
    %c0_48 = arith.constant 0 : index
    %c0_49 = arith.constant 0 : index
    %c0_50 = arith.constant 0 : index
    %153 = vector.load %arg3[%c0_48, %c0_49, %c0_50] : memref<2x32x64xbf16, #tpu.memory_space<vmem>>, vector<1x32x64xbf16>
    %154 = vector.shape_cast %153 : vector<1x32x64xbf16> to vector<32x64xbf16>
    %cst_51 = arith.constant dense<0.000000e+00> : vector<16x64xf32>
    %155 = tpu.matmul %152, %154, %cst_51 {dimension_numbers = #tpu.dot_dimension_numbers<[1], [0], [0], [1], [0, 0, 1, 1], [], []>} : vector<16x32xbf16>, vector<32x64xbf16>, vector<16x64xf32> -> vector<16x64xf32>
    %cst_52 = arith.constant 5.000000e-01 : f32
    %156 = vector.broadcast %cst_52 : f32 to vector<16x64xf32>
    %157 = arith.mulf %156, %155 : vector<16x64xf32>
    %cst_53 = arith.constant 4.471500e-02 : f32
    %158 = vector.broadcast %cst_53 : f32 to vector<16x64xf32>
    %159 = arith.mulf %158, %155 : vector<16x64xf32>
    %160 = arith.mulf %159, %155 : vector<16x64xf32>
    %161 = arith.mulf %160, %155 : vector<16x64xf32>
    %162 = arith.addf %155, %161 : vector<16x64xf32>
    %cst_54 = arith.constant 0.797884583 : f32
    %163 = vector.broadcast %cst_54 : f32 to vector<16x64xf32>
    %164 = arith.mulf %163, %162 : vector<16x64xf32>
    %165 = math.tanh %164 : vector<16x64xf32>
    %cst_55 = arith.constant 1.000000e+00 : f32
    %166 = vector.broadcast %cst_55 : f32 to vector<16x64xf32>
    %167 = arith.addf %166, %165 : vector<16x64xf32>
    %168 = arith.mulf %157, %167 : vector<16x64xf32>
    %169 = arith.truncf %168 : vector<16x64xf32> to vector<16x64xbf16>
    %c0_56 = arith.constant 0 : index
    %c0_57 = arith.constant 0 : index
    %c0_58 = arith.constant 0 : index
    %170 = vector.load %arg4[%c0_56, %c0_57, %c0_58] : memref<2x64x32xbf16, #tpu.memory_space<vmem>>, vector<1x64x32xbf16>
    %171 = vector.shape_cast %170 : vector<1x64x32xbf16> to vector<64x32xbf16>
    %cst_59 = arith.constant dense<0.000000e+00> : vector<16x32xf32>
    %172 = tpu.matmul %169, %171, %cst_59 {dimension_numbers = #tpu.dot_dimension_numbers<[1], [0], [0], [1], [0, 0, 1, 1], [], []>} : vector<16x64xbf16>, vector<64x32xbf16>, vector<16x32xf32> -> vector<16x32xf32>
    %173 = arith.addf %125, %172 : vector<16x32xf32>
    %c1 = arith.constant 1 : index
    %c0_60 = arith.constant 0 : index
    %c0_61 = arith.constant 0 : index
    %174 = vector.load %arg5[%c1, %c0_60, %c0_61] : memref<2x1x32xf32, #tpu.memory_space<vmem>>, vector<1x1x32xf32>
    %175 = vector.shape_cast %174 : vector<1x1x32xf32> to vector<1x32xf32>
    %c1_62 = arith.constant 1 : index
    %c0_63 = arith.constant 0 : index
    %c0_64 = arith.constant 0 : index
    %176 = vector.load %arg6[%c1_62, %c0_63, %c0_64] : memref<2x1x32xf32, #tpu.memory_space<vmem>>, vector<1x1x32xf32>
    %177 = vector.shape_cast %176 : vector<1x1x32xf32> to vector<1x32xf32>
    %cst_65 = arith.constant dense<0.000000e+00> : vector<16xf32>
    %178 = vector.multi_reduction <add>, %173, %cst_65 [1] : vector<16x32xf32> to vector<16xf32>
    %179 = vector.shape_cast %178 : vector<16xf32> to vector<16x1xf32>
    %cst_66 = arith.constant 3.200000e+01 : f32
    %180 = vector.broadcast %cst_66 : f32 to vector<16x1xf32>
    %181 = arith.divf %179, %180 : vector<16x1xf32>
    %182 = vector.broadcast %181 : vector<16x1xf32> to vector<16x32xf32>
    %183 = arith.subf %173, %182 : vector<16x32xf32>
    %184 = arith.mulf %183, %183 : vector<16x32xf32>
    %cst_67 = arith.constant dense<0.000000e+00> : vector<16xf32>
    %185 = vector.multi_reduction <add>, %184, %cst_67 [1] : vector<16x32xf32> to vector<16xf32>
    %186 = vector.shape_cast %185 : vector<16xf32> to vector<16x1xf32>
    %cst_68 = arith.constant 3.200000e+01 : f32
    %187 = vector.broadcast %cst_68 : f32 to vector<16x1xf32>
    %188 = arith.divf %186, %187 : vector<16x1xf32>
    %189 = vector.broadcast %181 : vector<16x1xf32> to vector<16x32xf32>
    %190 = arith.subf %173, %189 : vector<16x32xf32>
    %cst_69 = arith.constant 9.99999974E-6 : f32
    %191 = vector.broadcast %cst_69 : f32 to vector<16x1xf32>
    %192 = arith.addf %188, %191 : vector<16x1xf32>
    %193 = math.rsqrt %192 : vector<16x1xf32>
    %194 = vector.broadcast %193 : vector<16x1xf32> to vector<16x32xf32>
    %195 = arith.mulf %190, %194 : vector<16x32xf32>
    %196 = vector.broadcast %175 : vector<1x32xf32> to vector<16x32xf32>
    %197 = arith.mulf %195, %196 : vector<16x32xf32>
    %198 = vector.broadcast %177 : vector<1x32xf32> to vector<16x32xf32>
    %199 = arith.addf %197, %198 : vector<16x32xf32>
    %200 = arith.truncf %199 : vector<16x32xf32> to vector<16x32xbf16>
    %c1_70 = arith.constant 1 : index
    %c0_71 = arith.constant 0 : index
    %c0_72 = arith.constant 0 : index
    %201 = vector.load %arg1[%c1_70, %c0_71, %c0_72] : memref<2x32x96xbf16, #tpu.memory_space<vmem>>, vector<1x32x96xbf16>
    %202 = vector.shape_cast %201 : vector<1x32x96xbf16> to vector<32x96xbf16>
    %cst_73 = arith.constant dense<0.000000e+00> : vector<16x96xf32>
    %203 = tpu.matmul %200, %202, %cst_73 {dimension_numbers = #tpu.dot_dimension_numbers<[1], [0], [0], [1], [0, 0, 1, 1], [], []>} : vector<16x32xbf16>, vector<32x96xbf16>, vector<16x96xf32> -> vector<16x96xf32>
    %204 = vector.extract_strided_slice %203 {offsets = [0, 0], sizes = [16, 32], strides = [1, 1]} : vector<16x96xf32> to vector<16x32xf32>
    %205 = vector.extract_strided_slice %203 {offsets = [0, 32], sizes = [16, 32], strides = [1, 1]} : vector<16x96xf32> to vector<16x32xf32>
    %206 = vector.extract_strided_slice %203 {offsets = [0, 64], sizes = [16, 32], strides = [1, 1]} : vector<16x96xf32> to vector<16x32xf32>
    %207 = vector.extract_strided_slice %204 {offsets = [0, 0], sizes = [16, 8], strides = [1, 1]} : vector<16x32xf32> to vector<16x8xf32>
    %208 = vector.extract_strided_slice %205 {offsets = [0, 0], sizes = [16, 8], strides = [1, 1]} : vector<16x32xf32> to vector<16x8xf32>
    %209 = vector.extract_strided_slice %206 {offsets = [0, 0], sizes = [16, 8], strides = [1, 1]} : vector<16x32xf32> to vector<16x8xf32>
    %210 = arith.truncf %207 : vector<16x8xf32> to vector<16x8xbf16>
    %211 = arith.truncf %208 : vector<16x8xf32> to vector<16x8xbf16>
    %cst_74 = arith.constant dense<0.000000e+00> : vector<16x16xf32>
    %212 = tpu.matmul %210, %211, %cst_74 {dimension_numbers = #tpu.dot_dimension_numbers<[1], [1], [0], [0], [0, 0, 1, 0], [], []>} : vector<16x8xbf16>, vector<16x8xbf16>, vector<16x16xf32> -> vector<16x16xf32>
    %213 = arith.addf %212, %6 : vector<16x16xf32>
    %cst_75 = arith.constant dense<0xFF800000> : vector<16xf32>
    %214 = vector.multi_reduction <maximumf>, %213, %cst_75 [1] : vector<16x16xf32> to vector<16xf32>
    %215 = vector.shape_cast %214 : vector<16xf32> to vector<16x1xf32>
    %216 = vector.broadcast %215 : vector<16x1xf32> to vector<16x16xf32>
    %217 = arith.subf %213, %216 : vector<16x16xf32>
    %218 = math.exp %217 : vector<16x16xf32>
    %cst_76 = arith.constant dense<0.000000e+00> : vector<16xf32>
    %219 = vector.multi_reduction <add>, %218, %cst_76 [1] : vector<16x16xf32> to vector<16xf32>
    %220 = vector.shape_cast %219 : vector<16xf32> to vector<16x1xf32>
    %221 = tpu.reciprocal %220 {approx = true} : vector<16x1xf32> -> vector<16x1xf32>
    %222 = vector.broadcast %221 : vector<16x1xf32> to vector<16x16xf32>
    %223 = arith.mulf %218, %222 : vector<16x16xf32>
    %224 = arith.truncf %223 : vector<16x16xf32> to vector<16x16xbf16>
    %225 = arith.truncf %209 : vector<16x8xf32> to vector<16x8xbf16>
    %cst_77 = arith.constant dense<0.000000e+00> : vector<16x8xf32>
    %226 = tpu.matmul %224, %225, %cst_77 {dimension_numbers = #tpu.dot_dimension_numbers<[1], [0], [0], [1], [0, 0, 1, 1], [], []>} : vector<16x16xbf16>, vector<16x8xbf16>, vector<16x8xf32> -> vector<16x8xf32>
    %227 = vector.extract_strided_slice %204 {offsets = [0, 8], sizes = [16, 8], strides = [1, 1]} : vector<16x32xf32> to vector<16x8xf32>
    %228 = vector.extract_strided_slice %205 {offsets = [0, 8], sizes = [16, 8], strides = [1, 1]} : vector<16x32xf32> to vector<16x8xf32>
    %229 = vector.extract_strided_slice %206 {offsets = [0, 8], sizes = [16, 8], strides = [1, 1]} : vector<16x32xf32> to vector<16x8xf32>
    %230 = arith.truncf %227 : vector<16x8xf32> to vector<16x8xbf16>
    %231 = arith.truncf %228 : vector<16x8xf32> to vector<16x8xbf16>
    %cst_78 = arith.constant dense<0.000000e+00> : vector<16x16xf32>
    %232 = tpu.matmul %230, %231, %cst_78 {dimension_numbers = #tpu.dot_dimension_numbers<[1], [1], [0], [0], [0, 0, 1, 0], [], []>} : vector<16x8xbf16>, vector<16x8xbf16>, vector<16x16xf32> -> vector<16x16xf32>
    %233 = arith.addf %232, %6 : vector<16x16xf32>
    %cst_79 = arith.constant dense<0xFF800000> : vector<16xf32>
    %234 = vector.multi_reduction <maximumf>, %233, %cst_79 [1] : vector<16x16xf32> to vector<16xf32>
    %235 = vector.shape_cast %234 : vector<16xf32> to vector<16x1xf32>
    %236 = vector.broadcast %235 : vector<16x1xf32> to vector<16x16xf32>
    %237 = arith.subf %233, %236 : vector<16x16xf32>
    %238 = math.exp %237 : vector<16x16xf32>
    %cst_80 = arith.constant dense<0.000000e+00> : vector<16xf32>
    %239 = vector.multi_reduction <add>, %238, %cst_80 [1] : vector<16x16xf32> to vector<16xf32>
    %240 = vector.shape_cast %239 : vector<16xf32> to vector<16x1xf32>
    %241 = tpu.reciprocal %240 {approx = true} : vector<16x1xf32> -> vector<16x1xf32>
    %242 = vector.broadcast %241 : vector<16x1xf32> to vector<16x16xf32>
    %243 = arith.mulf %238, %242 : vector<16x16xf32>
    %244 = arith.truncf %243 : vector<16x16xf32> to vector<16x16xbf16>
    %245 = arith.truncf %229 : vector<16x8xf32> to vector<16x8xbf16>
    %cst_81 = arith.constant dense<0.000000e+00> : vector<16x8xf32>
    %246 = tpu.matmul %244, %245, %cst_81 {dimension_numbers = #tpu.dot_dimension_numbers<[1], [0], [0], [1], [0, 0, 1, 1], [], []>} : vector<16x16xbf16>, vector<16x8xbf16>, vector<16x8xf32> -> vector<16x8xf32>
    %247 = vector.extract_strided_slice %204 {offsets = [0, 16], sizes = [16, 8], strides = [1, 1]} : vector<16x32xf32> to vector<16x8xf32>
    %248 = vector.extract_strided_slice %205 {offsets = [0, 16], sizes = [16, 8], strides = [1, 1]} : vector<16x32xf32> to vector<16x8xf32>
    %249 = vector.extract_strided_slice %206 {offsets = [0, 16], sizes = [16, 8], strides = [1, 1]} : vector<16x32xf32> to vector<16x8xf32>
    %250 = arith.truncf %247 : vector<16x8xf32> to vector<16x8xbf16>
    %251 = arith.truncf %248 : vector<16x8xf32> to vector<16x8xbf16>
    %cst_82 = arith.constant dense<0.000000e+00> : vector<16x16xf32>
    %252 = tpu.matmul %250, %251, %cst_82 {dimension_numbers = #tpu.dot_dimension_numbers<[1], [1], [0], [0], [0, 0, 1, 0], [], []>} : vector<16x8xbf16>, vector<16x8xbf16>, vector<16x16xf32> -> vector<16x16xf32>
    %253 = arith.addf %252, %6 : vector<16x16xf32>
    %cst_83 = arith.constant dense<0xFF800000> : vector<16xf32>
    %254 = vector.multi_reduction <maximumf>, %253, %cst_83 [1] : vector<16x16xf32> to vector<16xf32>
    %255 = vector.shape_cast %254 : vector<16xf32> to vector<16x1xf32>
    %256 = vector.broadcast %255 : vector<16x1xf32> to vector<16x16xf32>
    %257 = arith.subf %253, %256 : vector<16x16xf32>
    %258 = math.exp %257 : vector<16x16xf32>
    %cst_84 = arith.constant dense<0.000000e+00> : vector<16xf32>
    %259 = vector.multi_reduction <add>, %258, %cst_84 [1] : vector<16x16xf32> to vector<16xf32>
    %260 = vector.shape_cast %259 : vector<16xf32> to vector<16x1xf32>
    %261 = tpu.reciprocal %260 {approx = true} : vector<16x1xf32> -> vector<16x1xf32>
    %262 = vector.broadcast %261 : vector<16x1xf32> to vector<16x16xf32>
    %263 = arith.mulf %258, %262 : vector<16x16xf32>
    %264 = arith.truncf %263 : vector<16x16xf32> to vector<16x16xbf16>
    %265 = arith.truncf %249 : vector<16x8xf32> to vector<16x8xbf16>
    %cst_85 = arith.constant dense<0.000000e+00> : vector<16x8xf32>
    %266 = tpu.matmul %264, %265, %cst_85 {dimension_numbers = #tpu.dot_dimension_numbers<[1], [0], [0], [1], [0, 0, 1, 1], [], []>} : vector<16x16xbf16>, vector<16x8xbf16>, vector<16x8xf32> -> vector<16x8xf32>
    %267 = vector.extract_strided_slice %204 {offsets = [0, 24], sizes = [16, 8], strides = [1, 1]} : vector<16x32xf32> to vector<16x8xf32>
    %268 = vector.extract_strided_slice %205 {offsets = [0, 24], sizes = [16, 8], strides = [1, 1]} : vector<16x32xf32> to vector<16x8xf32>
    %269 = vector.extract_strided_slice %206 {offsets = [0, 24], sizes = [16, 8], strides = [1, 1]} : vector<16x32xf32> to vector<16x8xf32>
    %270 = arith.truncf %267 : vector<16x8xf32> to vector<16x8xbf16>
    %271 = arith.truncf %268 : vector<16x8xf32> to vector<16x8xbf16>
    %cst_86 = arith.constant dense<0.000000e+00> : vector<16x16xf32>
    %272 = tpu.matmul %270, %271, %cst_86 {dimension_numbers = #tpu.dot_dimension_numbers<[1], [1], [0], [0], [0, 0, 1, 0], [], []>} : vector<16x8xbf16>, vector<16x8xbf16>, vector<16x16xf32> -> vector<16x16xf32>
    %273 = arith.addf %272, %6 : vector<16x16xf32>
    %cst_87 = arith.constant dense<0xFF800000> : vector<16xf32>
    %274 = vector.multi_reduction <maximumf>, %273, %cst_87 [1] : vector<16x16xf32> to vector<16xf32>
    %275 = vector.shape_cast %274 : vector<16xf32> to vector<16x1xf32>
    %276 = vector.broadcast %275 : vector<16x1xf32> to vector<16x16xf32>
    %277 = arith.subf %273, %276 : vector<16x16xf32>
    %278 = math.exp %277 : vector<16x16xf32>
    %cst_88 = arith.constant dense<0.000000e+00> : vector<16xf32>
    %279 = vector.multi_reduction <add>, %278, %cst_88 [1] : vector<16x16xf32> to vector<16xf32>
    %280 = vector.shape_cast %279 : vector<16xf32> to vector<16x1xf32>
    %281 = tpu.reciprocal %280 {approx = true} : vector<16x1xf32> -> vector<16x1xf32>
    %282 = vector.broadcast %281 : vector<16x1xf32> to vector<16x16xf32>
    %283 = arith.mulf %278, %282 : vector<16x16xf32>
    %284 = arith.truncf %283 : vector<16x16xf32> to vector<16x16xbf16>
    %285 = arith.truncf %269 : vector<16x8xf32> to vector<16x8xbf16>
    %cst_89 = arith.constant dense<0.000000e+00> : vector<16x8xf32>
    %286 = tpu.matmul %284, %285, %cst_89 {dimension_numbers = #tpu.dot_dimension_numbers<[1], [0], [0], [1], [0, 0, 1, 1], [], []>} : vector<16x16xbf16>, vector<16x8xbf16>, vector<16x8xf32> -> vector<16x8xf32>
    %287 = tpu.concatenate %226, %246, %266, %286 in 1 : vector<16x8xf32>, vector<16x8xf32>, vector<16x8xf32>, vector<16x8xf32> -> vector<16x32xf32>
    %288 = arith.truncf %287 : vector<16x32xf32> to vector<16x32xbf16>
    %c1_90 = arith.constant 1 : index
    %c0_91 = arith.constant 0 : index
    %c0_92 = arith.constant 0 : index
    %289 = vector.load %arg2[%c1_90, %c0_91, %c0_92] : memref<2x32x32xbf16, #tpu.memory_space<vmem>>, vector<1x32x32xbf16>
    %290 = vector.shape_cast %289 : vector<1x32x32xbf16> to vector<32x32xbf16>
    %cst_93 = arith.constant dense<0.000000e+00> : vector<16x32xf32>
    %291 = tpu.matmul %288, %290, %cst_93 {dimension_numbers = #tpu.dot_dimension_numbers<[1], [0], [0], [1], [0, 0, 1, 1], [], []>} : vector<16x32xbf16>, vector<32x32xbf16>, vector<16x32xf32> -> vector<16x32xf32>
    %292 = arith.addf %173, %291 : vector<16x32xf32>
    %c1_94 = arith.constant 1 : index
    %c0_95 = arith.constant 0 : index
    %c0_96 = arith.constant 0 : index
    %293 = vector.load %arg7[%c1_94, %c0_95, %c0_96] : memref<2x1x32xf32, #tpu.memory_space<vmem>>, vector<1x1x32xf32>
    %294 = vector.shape_cast %293 : vector<1x1x32xf32> to vector<1x32xf32>
    %c1_97 = arith.constant 1 : index
    %c0_98 = arith.constant 0 : index
    %c0_99 = arith.constant 0 : index
    %295 = vector.load %arg8[%c1_97, %c0_98, %c0_99] : memref<2x1x32xf32, #tpu.memory_space<vmem>>, vector<1x1x32xf32>
    %296 = vector.shape_cast %295 : vector<1x1x32xf32> to vector<1x32xf32>
    %cst_100 = arith.constant dense<0.000000e+00> : vector<16xf32>
    %297 = vector.multi_reduction <add>, %292, %cst_100 [1] : vector<16x32xf32> to vector<16xf32>
    %298 = vector.shape_cast %297 : vector<16xf32> to vector<16x1xf32>
    %cst_101 = arith.constant 3.200000e+01 : f32
    %299 = vector.broadcast %cst_101 : f32 to vector<16x1xf32>
    %300 = arith.divf %298, %299 : vector<16x1xf32>
    %301 = vector.broadcast %300 : vector<16x1xf32> to vector<16x32xf32>
    %302 = arith.subf %292, %301 : vector<16x32xf32>
    %303 = arith.mulf %302, %302 : vector<16x32xf32>
    %cst_102 = arith.constant dense<0.000000e+00> : vector<16xf32>
    %304 = vector.multi_reduction <add>, %303, %cst_102 [1] : vector<16x32xf32> to vector<16xf32>
    %305 = vector.shape_cast %304 : vector<16xf32> to vector<16x1xf32>
    %cst_103 = arith.constant 3.200000e+01 : f32
    %306 = vector.broadcast %cst_103 : f32 to vector<16x1xf32>
    %307 = arith.divf %305, %306 : vector<16x1xf32>
    %308 = vector.broadcast %300 : vector<16x1xf32> to vector<16x32xf32>
    %309 = arith.subf %292, %308 : vector<16x32xf32>
    %cst_104 = arith.constant 9.99999974E-6 : f32
    %310 = vector.broadcast %cst_104 : f32 to vector<16x1xf32>
    %311 = arith.addf %307, %310 : vector<16x1xf32>
    %312 = math.rsqrt %311 : vector<16x1xf32>
    %313 = vector.broadcast %312 : vector<16x1xf32> to vector<16x32xf32>
    %314 = arith.mulf %309, %313 : vector<16x32xf32>
    %315 = vector.broadcast %294 : vector<1x32xf32> to vector<16x32xf32>
    %316 = arith.mulf %314, %315 : vector<16x32xf32>
    %317 = vector.broadcast %296 : vector<1x32xf32> to vector<16x32xf32>
    %318 = arith.addf %316, %317 : vector<16x32xf32>
    %319 = arith.truncf %318 : vector<16x32xf32> to vector<16x32xbf16>
    %c1_105 = arith.constant 1 : index
    %c0_106 = arith.constant 0 : index
    %c0_107 = arith.constant 0 : index
    %320 = vector.load %arg3[%c1_105, %c0_106, %c0_107] : memref<2x32x64xbf16, #tpu.memory_space<vmem>>, vector<1x32x64xbf16>
    %321 = vector.shape_cast %320 : vector<1x32x64xbf16> to vector<32x64xbf16>
    %cst_108 = arith.constant dense<0.000000e+00> : vector<16x64xf32>
    %322 = tpu.matmul %319, %321, %cst_108 {dimension_numbers = #tpu.dot_dimension_numbers<[1], [0], [0], [1], [0, 0, 1, 1], [], []>} : vector<16x32xbf16>, vector<32x64xbf16>, vector<16x64xf32> -> vector<16x64xf32>
    %cst_109 = arith.constant 5.000000e-01 : f32
    %323 = vector.broadcast %cst_109 : f32 to vector<16x64xf32>
    %324 = arith.mulf %323, %322 : vector<16x64xf32>
    %cst_110 = arith.constant 4.471500e-02 : f32
    %325 = vector.broadcast %cst_110 : f32 to vector<16x64xf32>
    %326 = arith.mulf %325, %322 : vector<16x64xf32>
    %327 = arith.mulf %326, %322 : vector<16x64xf32>
    %328 = arith.mulf %327, %322 : vector<16x64xf32>
    %329 = arith.addf %322, %328 : vector<16x64xf32>
    %cst_111 = arith.constant 0.797884583 : f32
    %330 = vector.broadcast %cst_111 : f32 to vector<16x64xf32>
    %331 = arith.mulf %330, %329 : vector<16x64xf32>
    %332 = math.tanh %331 : vector<16x64xf32>
    %cst_112 = arith.constant 1.000000e+00 : f32
    %333 = vector.broadcast %cst_112 : f32 to vector<16x64xf32>
    %334 = arith.addf %333, %332 : vector<16x64xf32>
    %335 = arith.mulf %324, %334 : vector<16x64xf32>
    %336 = arith.truncf %335 : vector<16x64xf32> to vector<16x64xbf16>
    %c1_113 = arith.constant 1 : index
    %c0_114 = arith.constant 0 : index
    %c0_115 = arith.constant 0 : index
    %337 = vector.load %arg4[%c1_113, %c0_114, %c0_115] : memref<2x64x32xbf16, #tpu.memory_space<vmem>>, vector<1x64x32xbf16>
    %338 = vector.shape_cast %337 : vector<1x64x32xbf16> to vector<64x32xbf16>
    %cst_116 = arith.constant dense<0.000000e+00> : vector<16x32xf32>
    %339 = tpu.matmul %336, %338, %cst_116 {dimension_numbers = #tpu.dot_dimension_numbers<[1], [0], [0], [1], [0, 0, 1, 1], [], []>} : vector<16x64xbf16>, vector<64x32xbf16>, vector<16x32xf32> -> vector<16x32xf32>
    %340 = arith.addf %292, %339 : vector<16x32xf32>
    %c0_117 = arith.constant 0 : index
    %c0_118 = arith.constant 0 : index
    %341 = vector.load %arg9[%c0_117, %c0_118] : memref<1x32xf32, #tpu.memory_space<vmem>>, vector<1x32xf32>
    %c0_119 = arith.constant 0 : index
    %c0_120 = arith.constant 0 : index
    %342 = vector.load %arg10[%c0_119, %c0_120] : memref<1x32xf32, #tpu.memory_space<vmem>>, vector<1x32xf32>
    %cst_121 = arith.constant dense<0.000000e+00> : vector<16xf32>
    %343 = vector.multi_reduction <add>, %340, %cst_121 [1] : vector<16x32xf32> to vector<16xf32>
    %344 = vector.shape_cast %343 : vector<16xf32> to vector<16x1xf32>
    %cst_122 = arith.constant 3.200000e+01 : f32
    %345 = vector.broadcast %cst_122 : f32 to vector<16x1xf32>
    %346 = arith.divf %344, %345 : vector<16x1xf32>
    %347 = vector.broadcast %346 : vector<16x1xf32> to vector<16x32xf32>
    %348 = arith.subf %340, %347 : vector<16x32xf32>
    %349 = arith.mulf %348, %348 : vector<16x32xf32>
    %cst_123 = arith.constant dense<0.000000e+00> : vector<16xf32>
    %350 = vector.multi_reduction <add>, %349, %cst_123 [1] : vector<16x32xf32> to vector<16xf32>
    %351 = vector.shape_cast %350 : vector<16xf32> to vector<16x1xf32>
    %cst_124 = arith.constant 3.200000e+01 : f32
    %352 = vector.broadcast %cst_124 : f32 to vector<16x1xf32>
    %353 = arith.divf %351, %352 : vector<16x1xf32>
    %354 = vector.broadcast %346 : vector<16x1xf32> to vector<16x32xf32>
    %355 = arith.subf %340, %354 : vector<16x32xf32>
    %cst_125 = arith.constant 9.99999974E-6 : f32
    %356 = vector.broadcast %cst_125 : f32 to vector<16x1xf32>
    %357 = arith.addf %353, %356 : vector<16x1xf32>
    %358 = math.rsqrt %357 : vector<16x1xf32>
    %359 = vector.broadcast %358 : vector<16x1xf32> to vector<16x32xf32>
    %360 = arith.mulf %355, %359 : vector<16x32xf32>
    %361 = vector.broadcast %341 : vector<1x32xf32> to vector<16x32xf32>
    %362 = arith.mulf %360, %361 : vector<16x32xf32>
    %363 = vector.broadcast %342 : vector<1x32xf32> to vector<16x32xf32>
    %364 = arith.addf %362, %363 : vector<16x32xf32>
    %365 = arith.truncf %364 : vector<16x32xf32> to vector<16x32xbf16>
    %c0_126 = arith.constant 0 : index
    %c0_127 = arith.constant 0 : index
    %366 = vector.load %arg11[%c0_126, %c0_127] : memref<32x128xbf16, #tpu.memory_space<vmem>>, vector<32x128xbf16>
    %cst_128 = arith.constant dense<0.000000e+00> : vector<16x128xf32>
    %367 = tpu.matmul %365, %366, %cst_128 {dimension_numbers = #tpu.dot_dimension_numbers<[1], [0], [0], [1], [0, 0, 1, 1], [], []>} : vector<16x32xbf16>, vector<32x128xbf16>, vector<16x128xf32> -> vector<16x128xf32>
    %c0_129 = arith.constant 0 : index
    %c0_130 = arith.constant 0 : index
    %368 = vector.load %arg12[%c0_129, %c0_130] : memref<16x128xf32, #tpu.memory_space<vmem>>, vector<16x128xf32>
    tpu.vector_store %arg12[%c0_129, %c0_130], %367 {strides = array<i32>} : memref<16x128xf32, #tpu.memory_space<vmem>>, vector<16x128xf32>,
    return
  }
}

</mosaic_0001>

<llo_original>
// kernel: custom-call.2
$region0: #{custom-call.2}
  %s0 = inlined_call_operand.hbm [shape: f32[16,128], index: 0, kind: output, shape index: {}]

// kernel: closed_call.20
$region0: #{closed_call.20}
  #allocation0 [shape = 'u32[]', space=smem, size = 0x4, offset = 0x4, fixed_abs, tag = 'smem constant byte address 0x4 - core index']
  #allocation1 [shape = 'u32[144,128]{1,0:T(1,128)}', space=vmem, size = 0x12000, scoped, tag = 'internal scratch']
  %s0 = inlined_call_operand.vmem [shape: f32[16,32], index: 0, kind: input, shape index: {}]
  %s1 = inlined_call_operand.vmem [shape: bf16[2,32,96], index: 1, kind: input, shape index: {}]
  %s2 = inlined_call_operand.vmem [shape: bf16[2,32,32], index: 2, kind: input, shape index: {}]
  %s3 = inlined_call_operand.vmem [shape: bf16[2,32,64], index: 3, kind: input, shape index: {}]
  %s4 = inlined_call_operand.vmem [shape: bf16[2,64,32], index: 4, kind: input, shape index: {}]
  %s5 = inlined_call_operand.vmem [shape: f32[2,1,32], index: 5, kind: input, shape index: {}]
  %s6 = inlined_call_operand.vmem [shape: f32[2,1,32], index: 6, kind: input, shape index: {}]
  %s7 = inlined_call_operand.vmem [shape: f32[2,1,32], index: 7, kind: input, shape index: {}]
  %s8 = inlined_call_operand.vmem [shape: f32[2,1,32], index: 8, kind: input, shape index: {}]
  %s9 = inlined_call_operand.vmem [shape: f32[1,32], index: 9, kind: input, shape index: {}]
  %s10 = inlined_call_operand.vmem [shape: f32[1,32], index: 10, kind: input, shape index: {}]
  %s11 = inlined_call_operand.vmem [shape: bf16[32,128], index: 11, kind: input, shape index: {}]
  %s12 = inlined_call_operand.vmem [shape: f32[16,128], index: 12, kind: output, shape index: {}]
  %s13 = sld [smem:[#allocation0]]
  $region58: #{closed_call.20} parent=0
    _
  %s15 = ssub.s32 1, %s13
  %s16 = scalar_select 0, %s15, %s13
  // Predicated region
  $region2: #{closed_call.20} parent=0 // pred_check
    _
  $region3: #{closed_call.20} parent=0 // pred_check_branch
    %18 = sbr.rel (0) target = $region5
  $region4: #{closed_call.20} parent=0 // pred_region
    _
  $region5: #{closed_call.20} parent=0 // pred_fallthru
    _
  // Predicated region
  $region6: #{closed_call.20} parent=0 // pred_check
    _
  $region7: #{closed_call.20} parent=0 // pred_check_branch
    %20 = sbr.rel (0) target = $region9
  $region8: #{closed_call.20} parent=0 // pred_region
    _
  $region9: #{closed_call.20} parent=0 // pred_fallthru
    _
  // Predicated region
  $region10: #{closed_call.20} parent=0 // pred_check
    _
  $region11: #{closed_call.20} parent=0 // pred_check_branch
    %22 = sbr.rel (0) target = $region13
  $region12: #{closed_call.20} parent=0 // pred_region
    _
  $region13: #{closed_call.20} parent=0 // pred_fallthru
    _
  // Predicated region
  $region14: #{closed_call.20} parent=0 // pred_check
    _
  $region15: #{closed_call.20} parent=0 // pred_check_branch
    %24 = sbr.rel (0) target = $region17
  $region16: #{closed_call.20} parent=0 // pred_region
    _
  $region17: #{closed_call.20} parent=0 // pred_fallthru
    _
  // Predicated region
  $region18: #{closed_call.20} parent=0 // pred_check
    _
  $region19: #{closed_call.20} parent=0 // pred_check_branch
    %26 = sbr.rel (0) target = $region21
  $region20: #{closed_call.20} parent=0 // pred_region
    _
  $region21: #{closed_call.20} parent=0 // pred_fallthru
    _
  // Predicated region
  $region22: #{closed_call.20} parent=0 // pred_check
    _
  $region23: #{closed_call.20} parent=0 // pred_check_branch
    %28 = sbr.rel (0) target = $region25
  $region24: #{closed_call.20} parent=0 // pred_region
    _
  $region25: #{closed_call.20} parent=0 // pred_fallthru
    _
  // Predicated region
  $region26: #{closed_call.20} parent=0 // pred_check
    _
  $region27: #{closed_call.20} parent=0 // pred_check_branch
    %30 = sbr.rel (0) target = $region29
  $region28: #{closed_call.20} parent=0 // pred_region
    _
  $region29: #{closed_call.20} parent=0 // pred_fallthru
    _
  // Predicated region
  $region30: #{closed_call.20} parent=0 // pred_check
    _
  $region31: #{closed_call.20} parent=0 // pred_check_branch
    %32 = sbr.rel (0) target = $region33
  $region32: #{closed_call.20} parent=0 // pred_region
    _
  $region33: #{closed_call.20} parent=0 // pred_fallthru
    _
  // Predicated region
  $region34: #{closed_call.20} parent=0 // pred_check
    _
  $region35: #{closed_call.20} parent=0 // pred_check_branch
    %34 = sbr.rel (0) target = $region37
  $region36: #{closed_call.20} parent=0 // pred_region
    _
  $region37: #{closed_call.20} parent=0 // pred_fallthru
    _
  // Predicated region
  $region38: #{closed_call.20} parent=0 // pred_check
    _
  $region39: #{closed_call.20} parent=0 // pred_check_branch
    %36 = sbr.rel (0) target = $region41
  $region40: #{closed_call.20} parent=0 // pred_region
    _
  $region41: #{closed_call.20} parent=0 // pred_fallthru
    _
  // Predicated region
  $region42: #{closed_call.20} parent=0 // pred_check
    _
  $region43: #{closed_call.20} parent=0 // pred_check_branch
    %38 = sbr.rel (0) target = $region45
  $region44: #{closed_call.20} parent=0 // pred_region
    _
  $region45: #{closed_call.20} parent=0 // pred_fallthru
    _
  // Predicated region
  $region46: #{closed_call.20} parent=0 // pred_check
    _
  $region47: #{closed_call.20} parent=0 // pred_check_branch
    %40 = sbr.rel (0) target = $region49
  $region48: #{closed_call.20} parent=0 // pred_region
    _
  $region49: #{closed_call.20} parent=0 // pred_fallthru
    _
  %v42 = vld [vmem:[%s0] sm:$0xff]
  %v43 = vld [vmem:[%s0 + $0x8] sm:$0xff]
  %v44 = vlaneseq
  %v45 = vshrl.u32 %v44, 7
  %v46 = vadd.s32 %v45, 8
  %v47 = vlaneseq
  %v48 = vand.u32 %v47, 127
  %vm49 = vcmp.le.s32.totalorder %v48, %v45
  %vm50 = vcmp.le.s32.totalorder %v48, %v46
  %v51 = vsel %vm49, 0.0, -1e+09
  %v52 = vsel %vm50, 0.0, -1e+09
  %v53 = vld [vmem:[%s5] sm:$0x1]
  %v54 = vld [vmem:[%s6] sm:$0x1]
  %vm55 = vcmask 261120
  %v56 = vsel %vm55, %v42, 0.0
  %57 = vadd.xlane.f32.xlu0 %v56
  %v58 = vpop.xlane.xlu0 %57
  %v59 = vsel %vm55, %v43, 0.0
  %60 = vadd.xlane.f32.xlu0 %v59
  %v61 = vpop.xlane.xlu0 %60
  %v62 = vrcp.pop 32.0
  %v63 = vmul.f32 %v58, %v62
  %v64 = vmul.f32 %v61, %v62
  %v65 = vsub.f32 %v42, %v63
  %v66 = vsub.f32 %v43, %v64
  %v67 = vmul.f32 %v65, %v65
  %v68 = vmul.f32 %v66, %v66
  %v69 = vsel %vm55, %v67, 0.0
  %70 = vadd.xlane.f32.xlu0 %v69
  %v71 = vpop.xlane.xlu0 %70
  %v72 = vsel %vm55, %v68, 0.0
  %73 = vadd.xlane.f32.xlu0 %v72
  %v74 = vpop.xlane.xlu0 %73
  %v75 = vmul.f32 %v71, %v62
  %v76 = vmul.f32 %v74, %v62
  %v77 = vadd.f32 %v75, 1e-05
  %v78 = vadd.f32 %v76, 1e-05
  %v79 = vrsqrt.pop %v77
  %v80 = vrsqrt.pop %v78
  %v81 = vmul.f32 %v65, %v79
  %v82 = vmul.f32 %v66, %v80
  %v84 = vlaneseq
  %v85 = vshrl.u32 %v84, 7
  %v86 = vsub.s32 0, %v85
  %v87 = vrot.slane %v53, %v86
  %v89 = vmul.f32 %v81, %v87
  %v90 = vmul.f32 %v82, %v87
  %v92 = vlaneseq
  %v93 = vshrl.u32 %v92, 7
  %v94 = vsub.s32 0, %v93
  %v95 = vrot.slane %v54, %v94
  %v97 = vadd.f32 %v89, %v95
  %v98 = vadd.f32 %v90, %v95
  %v99 = vpack.c.bf16 %v98, %v97
  %v100 = vld [vmem:[%s1] sm:$0xf]
  %v101 = vld [vmem:[%s1 + $0x4] sm:$0xf]
  %v102 = vld [vmem:[%s1 + $0x8] sm:$0xf]
  %v103 = vld [vmem:[%s1 + $0xc] sm:$0xf]
  %v108 = vunpack.c.l.b16 %v100
  %v109 = vunpack.c.l.b16 %v101
  %v110 = vunpack.c.l.b16 %v102
  %v111 = vunpack.c.l.b16 %v103
  %v112 = vpack.c.b16 %v109, %v108
  %v113 = vpack.c.b16 %v111, %v110
  %v117 = vsel %vm55, %v99, 0
  %119 = vmatprep.subr.bf16.mxu0 0
  %120 = vmatpush1.bf16.msra.mxu0 %v112
  %121 = vmatprep.subr.bf16.mxu0 0
  %122 = vmatpush1.bf16.msra.mxu0 %v113
  %123 = vmatprep.subr.bf16.mxu0 0
  %124 = vmatpush1.bf16.msra.mxu0 0
  %125 = vmatprep.subr.bf16.mxu0 0
  %126 = vmatpush1.bf16.msra.mxu0 0
  %127 = vmatprep.subr.bf16.mxu0 0
  %128 = vmatpush1.bf16.msra.mxu0 0
  %129 = vmatprep.subr.bf16.mxu0 0
  %130 = vmatpush1.bf16.msra.mxu0 0
  %131 = vmatprep.subr.bf16.mxu0 0
  %132 = vmatpush1.bf16.msra.mxu0 0
  %133 = vmatprep.subr.bf16.mxu0 0
  %134 = vmatpush1.bf16.msra.mxu0 0
  %135 = vmatprep.subr.bf16.mxu0 0
  %136 = vmatpush1.bf16.msra.mxu0 0
  %137 = vmatprep.subr.bf16.mxu0 0
  %138 = vmatpush1.bf16.msra.mxu0 0
  %139 = vmatprep.subr.bf16.mxu0 0
  %140 = vmatpush1.bf16.msra.mxu0 0
  %141 = vmatprep.subr.bf16.mxu0 0
  %142 = vmatpush1.bf16.msra.mxu0 0
  %143 = vmatprep.subr.bf16.mxu0 0
  %144 = vmatpush1.bf16.msra.mxu0 0
  %145 = vmatprep.subr.bf16.mxu0 0
  %146 = vmatpush1.bf16.msra.mxu0 0
  %147 = vmatprep.subr.bf16.mxu0 0
  %148 = vmatpush1.bf16.msra.mxu0 0
  %149 = vmatprep.subr.bf16.mxu0 0
  %150 = vmatpush1.bf16.msra.mxu0 0
  %151 = vmatprep.mubr.bf16.mxu0 0
  %152 = vmatmul.mubr.bf16.gmra.mrb[0].mxu0 %v117
  %v153 = vpop.f32.mrb[0].mxu0
  %v154 = vadd.f32 0.0, %v153
  %v155 = vpop.f32.mrb[0].mxu0
  %v156 = vpop.f32.mrb[0].mxu0
  %v157 = vadd.f32 0.0, %v156
  %v158 = vpop.f32.mrb[0].mxu0
  %159 = vdwg.mxu0
  %v160 = vpack.c.bf16 %v157, %v154
  %162 = vrot.lane.b32.xlu0 %v160, 96
  %v163 = vpop.permute.xlu0 %162
  %vm164 = vcmask 64512
  %v166 = vsel %vm164, %v160, 0
  %v169 = vsel %vm164, %v163, 0
  %171 = vmatprep.subr.bf16.mxu0 0
  %172 = vmatpush1.bf16.xpose.msra.mxu0 %v169
  %173 = vmatprep.subr.bf16.mxu0 0
  %174 = vmatpush1.bf16.xpose.msra.mxu0 0
  %175 = vmatprep.subr.bf16.mxu0 0
  %176 = vmatpush1.bf16.xpose.msra.mxu0 0
  %177 = vmatprep.subr.bf16.mxu0 0
  %178 = vmatpush1.bf16.xpose.msra.mxu0 0
  %179 = vmatprep.subr.bf16.mxu0 0
  %180 = vmatpush1.bf16.xpose.msra.mxu0 0
  %181 = vmatprep.subr.bf16.mxu0 0
  %182 = vmatpush1.bf16.xpose.msra.mxu0 0
  %183 = vmatprep.subr.bf16.mxu0 0
  %184 = vmatpush1.bf16.xpose.msra.mxu0 0
  %185 = vmatprep.subr.bf16.mxu0 0
  %186 = vmatpush1.bf16.xpose.msra.mxu0 0
  %187 = vmatprep.subr.bf16.mxu0 0
  %188 = vmatpush1.bf16.xpose.msra.mxu0 0
  %189 = vmatprep.subr.bf16.mxu0 0
  %190 = vmatpush1.bf16.xpose.msra.mxu0 0
  %191 = vmatprep.subr.bf16.mxu0 0
  %192 = vmatpush1.bf16.xpose.msra.mxu0 0
  %193 = vmatprep.subr.bf16.mxu0 0
  %194 = vmatpush1.bf16.xpose.msra.mxu0 0
  %195 = vmatprep.subr.bf16.mxu0 0
  %196 = vmatpush1.bf16.xpose.msra.mxu0 0
  %197 = vmatprep.subr.bf16.mxu0 0
  %198 = vmatpush1.bf16.xpose.msra.mxu0 0
  %199 = vmatprep.subr.bf16.mxu0 0
  %200 = vmatpush1.bf16.xpose.msra.mxu0 0
  %201 = vmatprep.subr.bf16.mxu0 0
  %202 = vmatpush1.bf16.xpose.msra.mxu0 0
  %203 = vmatprep.mubr.bf16.mxu0 0
  %204 = vmatmul.mubr.bf16.gmra.mrb[0].mxu0 %v166
  %v205 = vpop.f32.mrb[0].mxu0
  %v206 = vadd.f32 %v51, %v205
  %v207 = vpop.f32.mrb[0].mxu0
  %v208 = vpop.f32.mrb[0].mxu0
  %v209 = vadd.f32 %v52, %v208
  %v210 = vpop.f32.mrb[0].mxu0
  %211 = vdwg.mxu0
  %vm212 = vcmask 130048
  %v213 = vsel %vm212, %v206, -inf
  %214 = vmax.xlane.f32.xlu0 %v213
  %v215 = vpop.xlane.xlu0 %214
  %v216 = vsel %vm212, %v209, -inf
  %217 = vmax.xlane.f32.xlu0 %v216
  %v218 = vpop.xlane.xlu0 %217
  %v219 = vsub.f32 %v206, %v215
  %v220 = vsub.f32 %v209, %v218
  %v221 = vmul.f32 %v219, 1.442695
  %v222 = vpow.pop %v221
  %v223 = vmul.f32 %v220, 1.442695
  %v224 = vpow.pop %v223
  %v225 = vsel %vm212, %v222, 0.0
  %226 = vadd.xlane.f32.xlu0 %v225
  %v227 = vpop.xlane.xlu0 %226
  %v228 = vsel %vm212, %v224, 0.0
  %229 = vadd.xlane.f32.xlu0 %v228
  %v230 = vpop.xlane.xlu0 %229
  %v231 = vrcp.pop %v227
  %v232 = vrcp.pop %v230
  %v233 = vmul.f32 %v222, %v231
  %v234 = vmul.f32 %v224, %v232
  %v235 = vpack.c.bf16 %v234, %v233
  %236 = vrot.lane.b32.xlu0 %v160, 64
  %v237 = vpop.permute.xlu0 %236
  %v240 = vsel %vm212, %v235, 0
  %242 = vmatprep.subr.bf16.mxu0 0
  %243 = vmatpush1.bf16.msra.mxu0 %v237
  %244 = vmatprep.subr.bf16.mxu0 0
  %245 = vmatpush1.bf16.msra.mxu0 0
  %246 = vmatprep.subr.bf16.mxu0 0
  %247 = vmatpush1.bf16.msra.mxu0 0
  %248 = vmatprep.subr.bf16.mxu0 0
  %249 = vmatpush1.bf16.msra.mxu0 0
  %250 = vmatprep.subr.bf16.mxu0 0
  %251 = vmatpush1.bf16.msra.mxu0 0
  %252 = vmatprep.subr.bf16.mxu0 0
  %253 = vmatpush1.bf16.msra.mxu0 0
  %254 = vmatprep.subr.bf16.mxu0 0
  %255 = vmatpush1.bf16.msra.mxu0 0
  %256 = vmatprep.subr.bf16.mxu0 0
  %257 = vmatpush1.bf16.msra.mxu0 0
  %258 = vmatprep.subr.bf16.mxu0 0
  %259 = vmatpush1.bf16.msra.mxu0 0
  %260 = vmatprep.subr.bf16.mxu0 0
  %261 = vmatpush1.bf16.msra.mxu0 0
  %262 = vmatprep.subr.bf16.mxu0 0
  %263 = vmatpush1.bf16.msra.mxu0 0
  %264 = vmatprep.subr.bf16.mxu0 0
  %265 = vmatpush1.bf16.msra.mxu0 0
  %266 = vmatprep.subr.bf16.mxu0 0
  %267 = vmatpush1.bf16.msra.mxu0 0
  %268 = vmatprep.subr.bf16.mxu0 0
  %269 = vmatpush1.bf16.msra.mxu0 0
  %270 = vmatprep.subr.bf16.mxu0 0
  %271 = vmatpush1.bf16.msra.mxu0 0
  %272 = vmatprep.subr.bf16.mxu0 0
  %273 = vmatpush1.bf16.msra.mxu0 0
  %274 = vmatprep.mubr.bf16.mxu0 0
  %275 = vmatmul.mubr.bf16.gmra.mrb[0].mxu0 %v240
  %v276 = vpop.f32.mrb[0].mxu0
  %v277 = vadd.f32 0.0, %v276
  %v278 = vpop.f32.mrb[0].mxu0
  %v279 = vpop.f32.mrb[0].mxu0
  %v280 = vadd.f32 0.0, %v279
  %v281 = vpop.f32.mrb[0].mxu0
  %282 = vdwg.mxu0
  %283 = vrot.lane.b32.xlu0 %v160, 120
  %v284 = vpop.permute.xlu0 %283
  %285 = vrot.lane.b32.xlu0 %v160, 88
  %v286 = vpop.permute.xlu0 %285
  %v288 = vsel %vm164, %v284, 0
  %v291 = vsel %vm164, %v286, 0
  %293 = vmatprep.subr.bf16.mxu0 0
  %294 = vmatpush1.bf16.xpose.msra.mxu0 %v291
  %295 = vmatprep.subr.bf16.mxu0 0
  %296 = vmatpush1.bf16.xpose.msra.mxu0 0
  %297 = vmatprep.subr.bf16.mxu0 0
  %298 = vmatpush1.bf16.xpose.msra.mxu0 0
  %299 = vmatprep.subr.bf16.mxu0 0
  %300 = vmatpush1.bf16.xpose.msra.mxu0 0
  %301 = vmatprep.subr.bf16.mxu0 0
  %302 = vmatpush1.bf16.xpose.msra.mxu0 0
  %303 = vmatprep.subr.bf16.mxu0 0
  %304 = vmatpush1.bf16.xpose.msra.mxu0 0
  %305 = vmatprep.subr.bf16.mxu0 0
  %306 = vmatpush1.bf16.xpose.msra.mxu0 0
  %307 = vmatprep.subr.bf16.mxu0 0
  %308 = vmatpush1.bf16.xpose.msra.mxu0 0
  %309 = vmatprep.subr.bf16.mxu0 0
  %310 = vmatpush1.bf16.xpose.msra.mxu0 0
  %311 = vmatprep.subr.bf16.mxu0 0
  %312 = vmatpush1.bf16.xpose.msra.mxu0 0
  %313 = vmatprep.subr.bf16.mxu0 0
  %314 = vmatpush1.bf16.xpose.msra.mxu0 0
  %315 = vmatprep.subr.bf16.mxu0 0
  %316 = vmatpush1.bf16.xpose.msra.mxu0 0
  %317 = vmatprep.subr.bf16.mxu0 0
  %318 = vmatpush1.bf16.xpose.msra.mxu0 0
  %319 = vmatprep.subr.bf16.mxu0 0
  %320 = vmatpush1.bf16.xpose.msra.mxu0 0
  %321 = vmatprep.subr.bf16.mxu0 0
  %322 = vmatpush1.bf16.xpose.msra.mxu0 0
  %323 = vmatprep.subr.bf16.mxu0 0
  %324 = vmatpush1.bf16.xpose.msra.mxu0 0
  %325 = vmatprep.mubr.bf16.mxu0 0
  %326 = vmatmul.mubr.bf16.gmra.mrb[0].mxu0 %v288
  %v327 = vpop.f32.mrb[0].mxu0
  %v328 = vadd.f32 %v51, %v327
  %v329 = vpop.f32.mrb[0].mxu0
  %v330 = vpop.f32.mrb[0].mxu0
  %v331 = vadd.f32 %v52, %v330
  %v332 = vpop.f32.mrb[0].mxu0
  %333 = vdwg.mxu0
  %v334 = vsel %vm212, %v328, -inf
  %335 = vmax.xlane.f32.xlu0 %v334
  %v336 = vpop.xlane.xlu0 %335
  %v337 = vsel %vm212, %v331, -inf
  %338 = vmax.xlane.f32.xlu0 %v337
  %v339 = vpop.xlane.xlu0 %338
  %v340 = vsub.f32 %v328, %v336
  %v341 = vsub.f32 %v331, %v339
  %v342 = vmul.f32 %v340, 1.442695
  %v343 = vpow.pop %v342
  %v344 = vmul.f32 %v341, 1.442695
  %v345 = vpow.pop %v344
  %v346 = vsel %vm212, %v343, 0.0
  %347 = vadd.xlane.f32.xlu0 %v346
  %v348 = vpop.xlane.xlu0 %347
  %v349 = vsel %vm212, %v345, 0.0
  %350 = vadd.xlane.f32.xlu0 %v349
  %v351 = vpop.xlane.xlu0 %350
  %v352 = vrcp.pop %v348
  %v353 = vrcp.pop %v351
  %v354 = vmul.f32 %v343, %v352
  %v355 = vmul.f32 %v345, %v353
  %v356 = vpack.c.bf16 %v355, %v354
  %357 = vrot.lane.b32.xlu0 %v160, 56
  %v358 = vpop.permute.xlu0 %357
  %v361 = vsel %vm212, %v356, 0
  %363 = vmatprep.subr.bf16.mxu0 0
  %364 = vmatpush1.bf16.msra.mxu0 %v358
  %365 = vmatprep.subr.bf16.mxu0 0
  %366 = vmatpush1.bf16.msra.mxu0 0
  %367 = vmatprep.subr.bf16.mxu0 0
  %368 = vmatpush1.bf16.msra.mxu0 0
  %369 = vmatprep.subr.bf16.mxu0 0
  %370 = vmatpush1.bf16.msra.mxu0 0
  %371 = vmatprep.subr.bf16.mxu0 0
  %372 = vmatpush1.bf16.msra.mxu0 0
  %373 = vmatprep.subr.bf16.mxu0 0
  %374 = vmatpush1.bf16.msra.mxu0 0
  %375 = vmatprep.subr.bf16.mxu0 0
  %376 = vmatpush1.bf16.msra.mxu0 0
  %377 = vmatprep.subr.bf16.mxu0 0
  %378 = vmatpush1.bf16.msra.mxu0 0
  %379 = vmatprep.subr.bf16.mxu0 0
  %380 = vmatpush1.bf16.msra.mxu0 0
  %381 = vmatprep.subr.bf16.mxu0 0
  %382 = vmatpush1.bf16.msra.mxu0 0
  %383 = vmatprep.subr.bf16.mxu0 0
  %384 = vmatpush1.bf16.msra.mxu0 0
  %385 = vmatprep.subr.bf16.mxu0 0
  %386 = vmatpush1.bf16.msra.mxu0 0
  %387 = vmatprep.subr.bf16.mxu0 0
  %388 = vmatpush1.bf16.msra.mxu0 0
  %389 = vmatprep.subr.bf16.mxu0 0
  %390 = vmatpush1.bf16.msra.mxu0 0
  %391 = vmatprep.subr.bf16.mxu0 0
  %392 = vmatpush1.bf16.msra.mxu0 0
  %393 = vmatprep.subr.bf16.mxu0 0
  %394 = vmatpush1.bf16.msra.mxu0 0
  %395 = vmatprep.mubr.bf16.mxu0 0
  %396 = vmatmul.mubr.bf16.gmra.mrb[0].mxu0 %v361
  %v397 = vpop.f32.mrb[0].mxu0
  %v398 = vadd.f32 0.0, %v397
  %v399 = vpop.f32.mrb[0].mxu0
  %v400 = vpop.f32.mrb[0].mxu0
  %v401 = vadd.f32 0.0, %v400
  %v402 = vpop.f32.mrb[0].mxu0
  %403 = vdwg.mxu0
  %404 = vrot.lane.b32.xlu0 %v160, 112
  %v405 = vpop.permute.xlu0 %404
  %406 = vrot.lane.b32.xlu0 %v160, 80
  %v407 = vpop.permute.xlu0 %406
  %v409 = vsel %vm164, %v405, 0
  %v412 = vsel %vm164, %v407, 0
  %414 = vmatprep.subr.bf16.mxu0 0
  %415 = vmatpush1.bf16.xpose.msra.mxu0 %v412
  %416 = vmatprep.subr.bf16.mxu0 0
  %417 = vmatpush1.bf16.xpose.msra.mxu0 0
  %418 = vmatprep.subr.bf16.mxu0 0
  %419 = vmatpush1.bf16.xpose.msra.mxu0 0
  %420 = vmatprep.subr.bf16.mxu0 0
  %421 = vmatpush1.bf16.xpose.msra.mxu0 0
  %422 = vmatprep.subr.bf16.mxu0 0
  %423 = vmatpush1.bf16.xpose.msra.mxu0 0
  %424 = vmatprep.subr.bf16.mxu0 0
  %425 = vmatpush1.bf16.xpose.msra.mxu0 0
  %426 = vmatprep.subr.bf16.mxu0 0
  %427 = vmatpush1.bf16.xpose.msra.mxu0 0
  %428 = vmatprep.subr.bf16.mxu0 0
  %429 = vmatpush1.bf16.xpose.msra.mxu0 0
  %430 = vmatprep.subr.bf16.mxu0 0
  %431 = vmatpush1.bf16.xpose.msra.mxu0 0
  %432 = vmatprep.subr.bf16.mxu0 0
  %433 = vmatpush1.bf16.xpose.msra.mxu0 0
  %434 = vmatprep.subr.bf16.mxu0 0
  %435 = vmatpush1.bf16.xpose.msra.mxu0 0
  %436 = vmatprep.subr.bf16.mxu0 0
  %437 = vmatpush1.bf16.xpose.msra.mxu0 0
  %438 = vmatprep.subr.bf16.mxu0 0
  %439 = vmatpush1.bf16.xpose.msra.mxu0 0
  %440 = vmatprep.subr.bf16.mxu0 0
  %441 = vmatpush1.bf16.xpose.msra.mxu0 0
  %442 = vmatprep.subr.bf16.mxu0 0
  %443 = vmatpush1.bf16.xpose.msra.mxu0 0
  %444 = vmatprep.subr.bf16.mxu0 0
  %445 = vmatpush1.bf16.xpose.msra.mxu0 0
  %446 = vmatprep.mubr.bf16.mxu0 0
  %447 = vmatmul.mubr.bf16.gmra.mrb[0].mxu0 %v409
  %v448 = vpop.f32.mrb[0].mxu0
  %v449 = vadd.f32 %v51, %v448
  %v450 = vpop.f32.mrb[0].mxu0
  %v451 = vpop.f32.mrb[0].mxu0
  %v452 = vadd.f32 %v52, %v451
  %v453 = vpop.f32.mrb[0].mxu0
  %454 = vdwg.mxu0
  %v455 = vsel %vm212, %v449, -inf
  %456 = vmax.xlane.f32.xlu0 %v455
  %v457 = vpop.xlane.xlu0 %456
  %v458 = vsel %vm212, %v452, -inf
  %459 = vmax.xlane.f32.xlu0 %v458
  %v460 = vpop.xlane.xlu0 %459
  %v461 = vsub.f32 %v449, %v457
  %v462 = vsub.f32 %v452, %v460
  %v463 = vmul.f32 %v461, 1.442695
  %v464 = vpow.pop %v463
  %v465 = vmul.f32 %v462, 1.442695
  %v466 = vpow.pop %v465
  %v467 = vsel %vm212, %v464, 0.0
  %468 = vadd.xlane.f32.xlu0 %v467
  %v469 = vpop.xlane.xlu0 %468
  %v470 = vsel %vm212, %v466, 0.0
  %471 = vadd.xlane.f32.xlu0 %v470
  %v472 = vpop.xlane.xlu0 %471
  %v473 = vrcp.pop %v469
  %v474 = vrcp.pop %v472
  %v475 = vmul.f32 %v464, %v473
  %v476 = vmul.f32 %v466, %v474
  %v477 = vpack.c.bf16 %v476, %v475
  %478 = vrot.lane.b32.xlu0 %v160, 48
  %v479 = vpop.permute.xlu0 %478
  %v482 = vsel %vm212, %v477, 0
  %484 = vmatprep.subr.bf16.mxu0 0
  %485 = vmatpush1.bf16.msra.mxu0 %v479
  %486 = vmatprep.subr.bf16.mxu0 0
  %487 = vmatpush1.bf16.msra.mxu0 0
  %488 = vmatprep.subr.bf16.mxu0 0
  %489 = vmatpush1.bf16.msra.mxu0 0
  %490 = vmatprep.subr.bf16.mxu0 0
  %491 = vmatpush1.bf16.msra.mxu0 0
  %492 = vmatprep.subr.bf16.mxu0 0
  %493 = vmatpush1.bf16.msra.mxu0 0
  %494 = vmatprep.subr.bf16.mxu0 0
  %495 = vmatpush1.bf16.msra.mxu0 0
  %496 = vmatprep.subr.bf16.mxu0 0
  %497 = vmatpush1.bf16.msra.mxu0 0
  %498 = vmatprep.subr.bf16.mxu0 0
  %499 = vmatpush1.bf16.msra.mxu0 0
  %500 = vmatprep.subr.bf16.mxu0 0
  %501 = vmatpush1.bf16.msra.mxu0 0
  %502 = vmatprep.subr.bf16.mxu0 0
  %503 = vmatpush1.bf16.msra.mxu0 0
  %504 = vmatprep.subr.bf16.mxu0 0
  %505 = vmatpush1.bf16.msra.mxu0 0
  %506 = vmatprep.subr.bf16.mxu0 0
  %507 = vmatpush1.bf16.msra.mxu0 0
  %508 = vmatprep.subr.bf16.mxu0 0
  %509 = vmatpush1.bf16.msra.mxu0 0
  %510 = vmatprep.subr.bf16.mxu0 0
  %511 = vmatpush1.bf16.msra.mxu0 0
  %512 = vmatprep.subr.bf16.mxu0 0
  %513 = vmatpush1.bf16.msra.mxu0 0
  %514 = vmatprep.subr.bf16.mxu0 0
  %515 = vmatpush1.bf16.msra.mxu0 0
  %516 = vmatprep.mubr.bf16.mxu0 0
  %517 = vmatmul.mubr.bf16.gmra.mrb[0].mxu0 %v482
  %v518 = vpop.f32.mrb[0].mxu0
  %v519 = vadd.f32 0.0, %v518
  %v520 = vpop.f32.mrb[0].mxu0
  %v521 = vpop.f32.mrb[0].mxu0
  %v522 = vadd.f32 0.0, %v521
  %v523 = vpop.f32.mrb[0].mxu0
  %524 = vdwg.mxu0
  %525 = vrot.lane.b32.xlu0 %v160, 104
  %v526 = vpop.permute.xlu0 %525
  %527 = vrot.lane.b32.xlu0 %v160, 72
  %v528 = vpop.permute.xlu0 %527
  %v530 = vsel %vm164, %v526, 0
  %v533 = vsel %vm164, %v528, 0
  %535 = vmatprep.subr.bf16.mxu0 0
  %536 = vmatpush1.bf16.xpose.msra.mxu0 %v533
  %537 = vmatprep.subr.bf16.mxu0 0
  %538 = vmatpush1.bf16.xpose.msra.mxu0 0
  %539 = vmatprep.subr.bf16.mxu0 0
  %540 = vmatpush1.bf16.xpose.msra.mxu0 0
  %541 = vmatprep.subr.bf16.mxu0 0
  %542 = vmatpush1.bf16.xpose.msra.mxu0 0
  %543 = vmatprep.subr.bf16.mxu0 0
  %544 = vmatpush1.bf16.xpose.msra.mxu0 0
  %545 = vmatprep.subr.bf16.mxu0 0
  %546 = vmatpush1.bf16.xpose.msra.mxu0 0
  %547 = vmatprep.subr.bf16.mxu0 0
  %548 = vmatpush1.bf16.xpose.msra.mxu0 0
  %549 = vmatprep.subr.bf16.mxu0 0
  %550 = vmatpush1.bf16.xpose.msra.mxu0 0
  %551 = vmatprep.subr.bf16.mxu0 0
  %552 = vmatpush1.bf16.xpose.msra.mxu0 0
  %553 = vmatprep.subr.bf16.mxu0 0
  %554 = vmatpush1.bf16.xpose.msra.mxu0 0
  %555 = vmatprep.subr.bf16.mxu0 0
  %556 = vmatpush1.bf16.xpose.msra.mxu0 0
  %557 = vmatprep.subr.bf16.mxu0 0
  %558 = vmatpush1.bf16.xpose.msra.mxu0 0
  %559 = vmatprep.subr.bf16.mxu0 0
  %560 = vmatpush1.bf16.xpose.msra.mxu0 0
  %561 = vmatprep.subr.bf16.mxu0 0
  %562 = vmatpush1.bf16.xpose.msra.mxu0 0
  %563 = vmatprep.subr.bf16.mxu0 0
  %564 = vmatpush1.bf16.xpose.msra.mxu0 0
  %565 = vmatprep.subr.bf16.mxu0 0
  %566 = vmatpush1.bf16.xpose.msra.mxu0 0
  %567 = vmatprep.mubr.bf16.mxu0 0
  %568 = vmatmul.mubr.bf16.gmra.mrb[0].mxu0 %v530
  %v569 = vpop.f32.mrb[0].mxu0
  %v570 = vadd.f32 %v51, %v569
  %v571 = vpop.f32.mrb[0].mxu0
  %v572 = vpop.f32.mrb[0].mxu0
  %v573 = vadd.f32 %v52, %v572
  %v574 = vpop.f32.mrb[0].mxu0
  %575 = vdwg.mxu0
  %v576 = vsel %vm212, %v570, -inf
  %577 = vmax.xlane.f32.xlu0 %v576
  %v578 = vpop.xlane.xlu0 %577
  %v579 = vsel %vm212, %v573, -inf
  %580 = vmax.xlane.f32.xlu0 %v579
  %v581 = vpop.xlane.xlu0 %580
  %v582 = vsub.f32 %v570, %v578
  %v583 = vsub.f32 %v573, %v581
  %v584 = vmul.f32 %v582, 1.442695
  %v585 = vpow.pop %v584
  %v586 = vmul.f32 %v583, 1.442695
  %v587 = vpow.pop %v586
  %v588 = vsel %vm212, %v585, 0.0
  %589 = vadd.xlane.f32.xlu0 %v588
  %v590 = vpop.xlane.xlu0 %589
  %v591 = vsel %vm212, %v587, 0.0
  %592 = vadd.xlane.f32.xlu0 %v591
  %v593 = vpop.xlane.xlu0 %592
  %v594 = vrcp.pop %v590
  %v595 = vrcp.pop %v593
  %v596 = vmul.f32 %v585, %v594
  %v597 = vmul.f32 %v587, %v595
  %v598 = vpack.c.bf16 %v597, %v596
  %599 = vrot.lane.b32.xlu0 %v160, 40
  %v600 = vpop.permute.xlu0 %599
  %v603 = vsel %vm212, %v598, 0
  %605 = vmatprep.subr.bf16.mxu0 0
  %606 = vmatpush1.bf16.msra.mxu0 %v600
  %607 = vmatprep.subr.bf16.mxu0 0
  %608 = vmatpush1.bf16.msra.mxu0 0
  %609 = vmatprep.subr.bf16.mxu0 0
  %610 = vmatpush1.bf16.msra.mxu0 0
  %611 = vmatprep.subr.bf16.mxu0 0
  %612 = vmatpush1.bf16.msra.mxu0 0
  %613 = vmatprep.subr.bf16.mxu0 0
  %614 = vmatpush1.bf16.msra.mxu0 0
  %615 = vmatprep.subr.bf16.mxu0 0
  %616 = vmatpush1.bf16.msra.mxu0 0
  %617 = vmatprep.subr.bf16.mxu0 0
  %618 = vmatpush1.bf16.msra.mxu0 0
  %619 = vmatprep.subr.bf16.mxu0 0
  %620 = vmatpush1.bf16.msra.mxu0 0
  %621 = vmatprep.subr.bf16.mxu0 0
  %622 = vmatpush1.bf16.msra.mxu0 0
  %623 = vmatprep.subr.bf16.mxu0 0
  %624 = vmatpush1.bf16.msra.mxu0 0
  %625 = vmatprep.subr.bf16.mxu0 0
  %626 = vmatpush1.bf16.msra.mxu0 0
  %627 = vmatprep.subr.bf16.mxu0 0
  %628 = vmatpush1.bf16.msra.mxu0 0
  %629 = vmatprep.subr.bf16.mxu0 0
  %630 = vmatpush1.bf16.msra.mxu0 0
  %631 = vmatprep.subr.bf16.mxu0 0
  %632 = vmatpush1.bf16.msra.mxu0 0
  %633 = vmatprep.subr.bf16.mxu0 0
  %634 = vmatpush1.bf16.msra.mxu0 0
  %635 = vmatprep.subr.bf16.mxu0 0
  %636 = vmatpush1.bf16.msra.mxu0 0
  %637 = vmatprep.mubr.bf16.mxu0 0
  %638 = vmatmul.mubr.bf16.gmra.mrb[0].mxu0 %v603
  %v639 = vpop.f32.mrb[0].mxu0
  %v640 = vadd.f32 0.0, %v639
  %v641 = vpop.f32.mrb[0].mxu0
  %v642 = vpop.f32.mrb[0].mxu0
  %v643 = vadd.f32 0.0, %v642
  %v644 = vpop.f32.mrb[0].mxu0
  %645 = vdwg.mxu0
  %648 = vrot.lane.b32.xlu0 %v398, 8
  %v649 = vpop.permute.xlu0 %648
  %650 = vrot.lane.b32.xlu0 %v401, 8
  %v651 = vpop.permute.xlu0 %650
  %656 = vrot.lane.b32.xlu0 %v519, 16
  %v657 = vpop.permute.xlu0 %656
  %658 = vrot.lane.b32.xlu0 %v522, 16
  %v659 = vpop.permute.xlu0 %658
  %664 = vrot.lane.b32.xlu0 %v640, 24
  %v665 = vpop.permute.xlu0 %664
  %666 = vrot.lane.b32.xlu0 %v643, 24
  %v667 = vpop.permute.xlu0 %666
  %v670 = vsel %vm164, %v277, %v649
  %v671 = vsel %vm164, %v280, %v651
  %v672 = vsel %vm212, %v670, %v657
  %v673 = vsel %vm212, %v671, %v659
  %vm674 = vcmask 195584
  %v675 = vsel %vm674, %v672, %v665
  %v676 = vsel %vm674, %v673, %v667
  %v677 = vpack.c.bf16 %v676, %v675
  %v678 = vld [vmem:[%s2] sm:$0xf]
  %v679 = vld [vmem:[%s2 + $0x4] sm:$0xf]
  %v680 = vld [vmem:[%s2 + $0x8] sm:$0xf]
  %v681 = vld [vmem:[%s2 + $0xc] sm:$0xf]
  %v686 = vunpack.c.l.b16 %v678
  %v687 = vunpack.c.l.b16 %v679
  %v688 = vunpack.c.l.b16 %v680
  %v689 = vunpack.c.l.b16 %v681
  %v690 = vpack.c.b16 %v687, %v686
  %v691 = vpack.c.b16 %v689, %v688
  %v695 = vsel %vm55, %v677, 0
  %697 = vmatprep.subr.bf16.mxu0 0
  %698 = vmatpush1.bf16.msra.mxu0 %v690
  %699 = vmatprep.subr.bf16.mxu0 0
  %700 = vmatpush1.bf16.msra.mxu0 %v691
  %701 = vmatprep.subr.bf16.mxu0 0
  %702 = vmatpush1.bf16.msra.mxu0 0
  %703 = vmatprep.subr.bf16.mxu0 0
  %704 = vmatpush1.bf16.msra.mxu0 0
  %705 = vmatprep.subr.bf16.mxu0 0
  %706 = vmatpush1.bf16.msra.mxu0 0
  %707 = vmatprep.subr.bf16.mxu0 0
  %708 = vmatpush1.bf16.msra.mxu0 0
  %709 = vmatprep.subr.bf16.mxu0 0
  %710 = vmatpush1.bf16.msra.mxu0 0
  %711 = vmatprep.subr.bf16.mxu0 0
  %712 = vmatpush1.bf16.msra.mxu0 0
  %713 = vmatprep.subr.bf16.mxu0 0
  %714 = vmatpush1.bf16.msra.mxu0 0
  %715 = vmatprep.subr.bf16.mxu0 0
  %716 = vmatpush1.bf16.msra.mxu0 0
  %717 = vmatprep.subr.bf16.mxu0 0
  %718 = vmatpush1.bf16.msra.mxu0 0
  %719 = vmatprep.subr.bf16.mxu0 0
  %720 = vmatpush1.bf16.msra.mxu0 0
  %721 = vmatprep.subr.bf16.mxu0 0
  %722 = vmatpush1.bf16.msra.mxu0 0
  %723 = vmatprep.subr.bf16.mxu0 0
  %724 = vmatpush1.bf16.msra.mxu0 0
  %725 = vmatprep.subr.bf16.mxu0 0
  %726 = vmatpush1.bf16.msra.mxu0 0
  %727 = vmatprep.subr.bf16.mxu0 0
  %728 = vmatpush1.bf16.msra.mxu0 0
  %729 = vmatprep.mubr.bf16.mxu0 0
  %730 = vmatmul.mubr.bf16.gmra.mrb[0].mxu0 %v695
  %v731 = vpop.f32.mrb[0].mxu0
  %v732 = vadd.f32 0.0, %v731
  %v733 = vpop.f32.mrb[0].mxu0
  %v734 = vpop.f32.mrb[0].mxu0
  %v735 = vadd.f32 0.0, %v734
  %v736 = vpop.f32.mrb[0].mxu0
  %737 = vdwg.mxu0
  %v738 = vadd.f32 %v42, %v732
  %v739 = vadd.f32 %v43, %v735
  %v740 = vld [vmem:[%s7] sm:$0x1]
  %v741 = vld [vmem:[%s8] sm:$0x1]
  %v742 = vsel %vm55, %v738, 0.0
  %743 = vadd.xlane.f32.xlu0 %v742
  %v744 = vpop.xlane.xlu0 %743
  %v745 = vsel %vm55, %v739, 0.0
  %746 = vadd.xlane.f32.xlu0 %v745
  %v747 = vpop.xlane.xlu0 %746
  %v748 = vmul.f32 %v744, %v62
  %v749 = vmul.f32 %v747, %v62
  %v750 = vsub.f32 %v738, %v748
  %v751 = vsub.f32 %v739, %v749
  %v752 = vmul.f32 %v750, %v750
  %v753 = vmul.f32 %v751, %v751
  %v754 = vsel %vm55, %v752, 0.0
  %755 = vadd.xlane.f32.xlu0 %v754
  %v756 = vpop.xlane.xlu0 %755
  %v757 = vsel %vm55, %v753, 0.0
  %758 = vadd.xlane.f32.xlu0 %v757
  %v759 = vpop.xlane.xlu0 %758
  %v760 = vmul.f32 %v756, %v62
  %v761 = vmul.f32 %v759, %v62
  %v762 = vadd.f32 %v760, 1e-05
  %v763 = vadd.f32 %v761, 1e-05
  %v764 = vrsqrt.pop %v762
  %v765 = vrsqrt.pop %v763
  %v766 = vmul.f32 %v750, %v764
  %v767 = vmul.f32 %v751, %v765
  %v769 = vlaneseq
  %v770 = vshrl.u32 %v769, 7
  %v771 = vsub.s32 0, %v770
  %v772 = vrot.slane %v740, %v771
  %v774 = vmul.f32 %v766, %v772
  %v775 = vmul.f32 %v767, %v772
  %v777 = vlaneseq
  %v778 = vshrl.u32 %v777, 7
  %v779 = vsub.s32 0, %v778
  %v780 = vrot.slane %v741, %v779
  %v782 = vadd.f32 %v774, %v780
  %v783 = vadd.f32 %v775, %v780
  %v784 = vpack.c.bf16 %v783, %v782
  %v785 = vld [vmem:[%s3] sm:$0xf]
  %v786 = vld [vmem:[%s3 + $0x4] sm:$0xf]
  %v787 = vld [vmem:[%s3 + $0x8] sm:$0xf]
  %v788 = vld [vmem:[%s3 + $0xc] sm:$0xf]
  %v793 = vunpack.c.l.b16 %v785
  %v794 = vunpack.c.l.b16 %v786
  %v795 = vunpack.c.l.b16 %v787
  %v796 = vunpack.c.l.b16 %v788
  %v797 = vpack.c.b16 %v794, %v793
  %v798 = vpack.c.b16 %v796, %v795
  %v802 = vsel %vm55, %v784, 0
  %804 = vmatprep.subr.bf16.mxu0 0
  %805 = vmatpush1.bf16.msra.mxu0 %v797
  %806 = vmatprep.subr.bf16.mxu0 0
  %807 = vmatpush1.bf16.msra.mxu0 %v798
  %808 = vmatprep.subr.bf16.mxu0 0
  %809 = vmatpush1.bf16.msra.mxu0 0
  %810 = vmatprep.subr.bf16.mxu0 0
  %811 = vmatpush1.bf16.msra.mxu0 0
  %812 = vmatprep.subr.bf16.mxu0 0
  %813 = vmatpush1.bf16.msra.mxu0 0
  %814 = vmatprep.subr.bf16.mxu0 0
  %815 = vmatpush1.bf16.msra.mxu0 0
  %816 = vmatprep.subr.bf16.mxu0 0
  %817 = vmatpush1.bf16.msra.mxu0 0
  %818 = vmatprep.subr.bf16.mxu0 0
  %819 = vmatpush1.bf16.msra.mxu0 0
  %820 = vmatprep.subr.bf16.mxu0 0
  %821 = vmatpush1.bf16.msra.mxu0 0
  %822 = vmatprep.subr.bf16.mxu0 0
  %823 = vmatpush1.bf16.msra.mxu0 0
  %824 = vmatprep.subr.bf16.mxu0 0
  %825 = vmatpush1.bf16.msra.mxu0 0
  %826 = vmatprep.subr.bf16.mxu0 0
  %827 = vmatpush1.bf16.msra.mxu0 0
  %828 = vmatprep.subr.bf16.mxu0 0
  %829 = vmatpush1.bf16.msra.mxu0 0
  %830 = vmatprep.subr.bf16.mxu0 0
  %831 = vmatpush1.bf16.msra.mxu0 0
  %832 = vmatprep.subr.bf16.mxu0 0
  %833 = vmatpush1.bf16.msra.mxu0 0
  %834 = vmatprep.subr.bf16.mxu0 0
  %835 = vmatpush1.bf16.msra.mxu0 0
  %836 = vmatprep.mubr.bf16.mxu0 0
  %837 = vmatmul.mubr.bf16.gmra.mrb[0].mxu0 %v802
  %v838 = vpop.f32.mrb[0].mxu0
  %v839 = vadd.f32 0.0, %v838
  %v840 = vpop.f32.mrb[0].mxu0
  %v841 = vpop.f32.mrb[0].mxu0
  %v842 = vadd.f32 0.0, %v841
  %v843 = vpop.f32.mrb[0].mxu0
  %844 = vdwg.mxu0
  %v845 = vmul.f32 %v839, 0.5
  %v846 = vmul.f32 %v842, 0.5
  %v847 = vmul.f32 %v839, 0.044715
  %v848 = vmul.f32 %v842, 0.044715
  %v849 = vmul.f32 %v847, %v839
  %v850 = vmul.f32 %v848, %v842
  %v851 = vmul.f32 %v849, %v839
  %v852 = vmul.f32 %v850, %v842
  %v853 = vadd.f32 %v839, %v851
  %v854 = vadd.f32 %v842, %v852
  %v855 = vmul.f32 %v853, 0.7978846
  %v856 = vmul.f32 %v854, 0.7978846
  %v857 = vtanh.pop %v855
  %v858 = vtanh.pop %v856
  %v859 = vadd.f32 %v857, 1.0
  %v860 = vadd.f32 %v858, 1.0
  %v861 = vmul.f32 %v845, %v859
  %v862 = vmul.f32 %v846, %v860
  %v863 = vpack.c.bf16 %v862, %v861
  %v864 = vld [vmem:[%s4] sm:$0xf]
  %v865 = vld [vmem:[%s4 + $0x4] sm:$0xf]
  %v866 = vld [vmem:[%s4 + $0x8] sm:$0xf]
  %v867 = vld [vmem:[%s4 + $0xc] sm:$0xf]
  %v868 = vld [vmem:[%s4 + $0x10] sm:$0xf]
  %v869 = vld [vmem:[%s4 + $0x14] sm:$0xf]
  %v870 = vld [vmem:[%s4 + $0x18] sm:$0xf]
  %v871 = vld [vmem:[%s4 + $0x1c] sm:$0xf]
  %v880 = vunpack.c.l.b16 %v864
  %v881 = vunpack.c.l.b16 %v865
  %v882 = vunpack.c.l.b16 %v866
  %v883 = vunpack.c.l.b16 %v867
  %v884 = vunpack.c.l.b16 %v868
  %v885 = vunpack.c.l.b16 %v869
  %v886 = vunpack.c.l.b16 %v870
  %v887 = vunpack.c.l.b16 %v871
  %v888 = vpack.c.b16 %v881, %v880
  %v889 = vpack.c.b16 %v883, %v882
  %v890 = vpack.c.b16 %v885, %v884
  %v891 = vpack.c.b16 %v887, %v886
  %vm896 = vcmask 523264
  %v898 = vsel %vm896, %v863, 0
  %900 = vmatprep.subr.bf16.mxu0 0
  %901 = vmatpush1.bf16.msra.mxu0 %v888
  %902 = vmatprep.subr.bf16.mxu0 0
  %903 = vmatpush1.bf16.msra.mxu0 %v889
  %904 = vmatprep.subr.bf16.mxu0 0
  %905 = vmatpush1.bf16.msra.mxu0 %v890
  %906 = vmatprep.subr.bf16.mxu0 0
  %907 = vmatpush1.bf16.msra.mxu0 %v891
  %908 = vmatprep.subr.bf16.mxu0 0
  %909 = vmatpush1.bf16.msra.mxu0 0
  %910 = vmatprep.subr.bf16.mxu0 0
  %911 = vmatpush1.bf16.msra.mxu0 0
  %912 = vmatprep.subr.bf16.mxu0 0
  %913 = vmatpush1.bf16.msra.mxu0 0
  %914 = vmatprep.subr.bf16.mxu0 0
  %915 = vmatpush1.bf16.msra.mxu0 0
  %916 = vmatprep.subr.bf16.mxu0 0
  %917 = vmatpush1.bf16.msra.mxu0 0
  %918 = vmatprep.subr.bf16.mxu0 0
  %919 = vmatpush1.bf16.msra.mxu0 0
  %920 = vmatprep.subr.bf16.mxu0 0
  %921 = vmatpush1.bf16.msra.mxu0 0
  %922 = vmatprep.subr.bf16.mxu0 0
  %923 = vmatpush1.bf16.msra.mxu0 0
  %924 = vmatprep.subr.bf16.mxu0 0
  %925 = vmatpush1.bf16.msra.mxu0 0
  %926 = vmatprep.subr.bf16.mxu0 0
  %927 = vmatpush1.bf16.msra.mxu0 0
  %928 = vmatprep.subr.bf16.mxu0 0
  %929 = vmatpush1.bf16.msra.mxu0 0
  %930 = vmatprep.subr.bf16.mxu0 0
  %931 = vmatpush1.bf16.msra.mxu0 0
  %932 = vmatprep.mubr.bf16.mxu0 0
  %933 = vmatmul.mubr.bf16.gmra.mrb[0].mxu0 %v898
  %v934 = vpop.f32.mrb[0].mxu0
  %v935 = vadd.f32 0.0, %v934
  %v936 = vpop.f32.mrb[0].mxu0
  %v937 = vpop.f32.mrb[0].mxu0
  %v938 = vadd.f32 0.0, %v937
  %v939 = vpop.f32.mrb[0].mxu0
  %940 = vdwg.mxu0
  %v941 = vadd.f32 %v738, %v935
  %v942 = vadd.f32 %v739, %v938
  %s943 = scalar_lea.vmem %s5, 1
  %v944 = vld [vmem:[%s943] sm:$0x1]
  %s945 = scalar_lea.vmem %s6, 1
  %v946 = vld [vmem:[%s945] sm:$0x1]
  %v947 = vsel %vm55, %v941, 0.0
  %948 = vadd.xlane.f32.xlu0 %v947
  %v949 = vpop.xlane.xlu0 %948
  %v950 = vsel %vm55, %v942, 0.0
  %951 = vadd.xlane.f32.xlu0 %v950
  %v952 = vpop.xlane.xlu0 %951
  %v953 = vmul.f32 %v949, %v62
  %v954 = vmul.f32 %v952, %v62
  %v955 = vsub.f32 %v941, %v953
  %v956 = vsub.f32 %v942, %v954
  %v957 = vmul.f32 %v955, %v955
  %v958 = vmul.f32 %v956, %v956
  %v959 = vsel %vm55, %v957, 0.0
  %960 = vadd.xlane.f32.xlu0 %v959
  %v961 = vpop.xlane.xlu0 %960
  %v962 = vsel %vm55, %v958, 0.0
  %963 = vadd.xlane.f32.xlu0 %v962
  %v964 = vpop.xlane.xlu0 %963
  %v965 = vmul.f32 %v961, %v62
  %v966 = vmul.f32 %v964, %v62
  %v967 = vadd.f32 %v965, 1e-05
  %v968 = vadd.f32 %v966, 1e-05
  %v969 = vrsqrt.pop %v967
  %v970 = vrsqrt.pop %v968
  %v971 = vmul.f32 %v955, %v969
  %v972 = vmul.f32 %v956, %v970
  %v974 = vlaneseq
  %v975 = vshrl.u32 %v974, 7
  %v976 = vsub.s32 0, %v975
  %v977 = vrot.slane %v944, %v976
  %v979 = vmul.f32 %v971, %v977
  %v980 = vmul.f32 %v972, %v977
  %v982 = vlaneseq
  %v983 = vshrl.u32 %v982, 7
  %v984 = vsub.s32 0, %v983
  %v985 = vrot.slane %v946, %v984
  %v987 = vadd.f32 %v979, %v985
  %v988 = vadd.f32 %v980, %v985
  %v989 = vpack.c.bf16 %v988, %v987
  %s990 = scalar_lea.vmem %s1, 16
  %v991 = vld [vmem:[%s990] sm:$0xf]
  %v992 = vld [vmem:[%s990 + $0x4] sm:$0xf]
  %v993 = vld [vmem:[%s990 + $0x8] sm:$0xf]
  %v994 = vld [vmem:[%s990 + $0xc] sm:$0xf]
  %v999 = vunpack.c.l.b16 %v991
  %v1000 = vunpack.c.l.b16 %v992
  %v1001 = vunpack.c.l.b16 %v993
  %v1002 = vunpack.c.l.b16 %v994
  %v1003 = vpack.c.b16 %v1000, %v999
  %v1004 = vpack.c.b16 %v1002, %v1001
  %v1008 = vsel %vm55, %v989, 0
  %1010 = vmatprep.subr.bf16.mxu0 0
  %1011 = vmatpush1.bf16.msra.mxu0 %v1003
  %1012 = vmatprep.subr.bf16.mxu0 0
  %1013 = vmatpush1.bf16.msra.mxu0 %v1004
  %1014 = vmatprep.subr.bf16.mxu0 0
  %1015 = vmatpush1.bf16.msra.mxu0 0
  %1016 = vmatprep.subr.bf16.mxu0 0
  %1017 = vmatpush1.bf16.msra.mxu0 0
  %1018 = vmatprep.subr.bf16.mxu0 0
  %1019 = vmatpush1.bf16.msra.mxu0 0
  %1020 = vmatprep.subr.bf16.mxu0 0
  %1021 = vmatpush1.bf16.msra.mxu0 0
  %1022 = vmatprep.subr.bf16.mxu0 0
  %1023 = vmatpush1.bf16.msra.mxu0 0
  %1024 = vmatprep.subr.bf16.mxu0 0
  %1025 = vmatpush1.bf16.msra.mxu0 0
  %1026 = vmatprep.subr.bf16.mxu0 0
  %1027 = vmatpush1.bf16.msra.mxu0 0
  %1028 = vmatprep.subr.bf16.mxu0 0
  %1029 = vmatpush1.bf16.msra.mxu0 0
  %1030 = vmatprep.subr.bf16.mxu0 0
  %1031 = vmatpush1.bf16.msra.mxu0 0
  %1032 = vmatprep.subr.bf16.mxu0 0
  %1033 = vmatpush1.bf16.msra.mxu0 0
  %1034 = vmatprep.subr.bf16.mxu0 0
  %1035 = vmatpush1.bf16.msra.mxu0 0
  %1036 = vmatprep.subr.bf16.mxu0 0
  %1037 = vmatpush1.bf16.msra.mxu0 0
  %1038 = vmatprep.subr.bf16.mxu0 0
  %1039 = vmatpush1.bf16.msra.mxu0 0
  %1040 = vmatprep.subr.bf16.mxu0 0
  %1041 = vmatpush1.bf16.msra.mxu0 0
  %1042 = vmatprep.mubr.bf16.mxu0 0
  %1043 = vmatmul.mubr.bf16.gmra.mrb[0].mxu0 %v1008
  %v1044 = vpop.f32.mrb[0].mxu0
  %v1045 = vadd.f32 0.0, %v1044
  %v1046 = vpop.f32.mrb[0].mxu0
  %v1047 = vpop.f32.mrb[0].mxu0
  %v1048 = vadd.f32 0.0, %v1047
  %v1049 = vpop.f32.mrb[0].mxu0
  %1050 = vdwg.mxu0
  %v1051 = vpack.c.bf16 %v1048, %v1045
  %1053 = vrot.lane.b32.xlu0 %v1051, 96
  %v1054 = vpop.permute.xlu0 %1053
  %v1056 = vsel %vm164, %v1051, 0
  %v1059 = vsel %vm164, %v1054, 0
  %1061 = vmatprep.subr.bf16.mxu0 0
  %1062 = vmatpush1.bf16.xpose.msra.mxu0 %v1059
  %1063 = vmatprep.subr.bf16.mxu0 0
  %1064 = vmatpush1.bf16.xpose.msra.mxu0 0
  %1065 = vmatprep.subr.bf16.mxu0 0
  %1066 = vmatpush1.bf16.xpose.msra.mxu0 0
  %1067 = vmatprep.subr.bf16.mxu0 0
  %1068 = vmatpush1.bf16.xpose.msra.mxu0 0
  %1069 = vmatprep.subr.bf16.mxu0 0
  %1070 = vmatpush1.bf16.xpose.msra.mxu0 0
  %1071 = vmatprep.subr.bf16.mxu0 0
  %1072 = vmatpush1.bf16.xpose.msra.mxu0 0
  %1073 = vmatprep.subr.bf16.mxu0 0
  %1074 = vmatpush1.bf16.xpose.msra.mxu0 0
  %1075 = vmatprep.subr.bf16.mxu0 0
  %1076 = vmatpush1.bf16.xpose.msra.mxu0 0
  %1077 = vmatprep.subr.bf16.mxu0 0
  %1078 = vmatpush1.bf16.xpose.msra.mxu0 0
  %1079 = vmatprep.subr.bf16.mxu0 0
  %1080 = vmatpush1.bf16.xpose.msra.mxu0 0
  %1081 = vmatprep.subr.bf16.mxu0 0
  %1082 = vmatpush1.bf16.xpose.msra.mxu0 0
  %1083 = vmatprep.subr.bf16.mxu0 0
  %1084 = vmatpush1.bf16.xpose.msra.mxu0 0
  %1085 = vmatprep.subr.bf16.mxu0 0
  %1086 = vmatpush1.bf16.xpose.msra.mxu0 0
  %1087 = vmatprep.subr.bf16.mxu0 0
  %1088 = vmatpush1.bf16.xpose.msra.mxu0 0
  %1089 = vmatprep.subr.bf16.mxu0 0
  %1090 = vmatpush1.bf16.xpose.msra.mxu0 0
  %1091 = vmatprep.subr.bf16.mxu0 0
  %1092 = vmatpush1.bf16.xpose.msra.mxu0 0
  %1093 = vmatprep.mubr.bf16.mxu0 0
  %1094 = vmatmul.mubr.bf16.gmra.mrb[0].mxu0 %v1056
  %v1095 = vpop.f32.mrb[0].mxu0
  %v1096 = vadd.f32 %v51, %v1095
  %v1097 = vpop.f32.mrb[0].mxu0
  %v1098 = vpop.f32.mrb[0].mxu0
  %v1099 = vadd.f32 %v52, %v1098
  %v1100 = vpop.f32.mrb[0].mxu0
  %1101 = vdwg.mxu0
  %v1102 = vsel %vm212, %v1096, -inf
  %1103 = vmax.xlane.f32.xlu0 %v1102
  %v1104 = vpop.xlane.xlu0 %1103
  %v1105 = vsel %vm212, %v1099, -inf
  %1106 = vmax.xlane.f32.xlu0 %v1105
  %v1107 = vpop.xlane.xlu0 %1106
  %v1108 = vsub.f32 %v1096, %v1104
  %v1109 = vsub.f32 %v1099, %v1107
  %v1110 = vmul.f32 %v1108, 1.442695
  %v1111 = vpow.pop %v1110
  %v1112 = vmul.f32 %v1109, 1.442695
  %v1113 = vpow.pop %v1112
  %v1114 = vsel %vm212, %v1111, 0.0
  %1115 = vadd.xlane.f32.xlu0 %v1114
  %v1116 = vpop.xlane.xlu0 %1115
  %v1117 = vsel %vm212, %v1113, 0.0
  %1118 = vadd.xlane.f32.xlu0 %v1117
  %v1119 = vpop.xlane.xlu0 %1118
  %v1120 = vrcp.pop %v1116
  %v1121 = vrcp.pop %v1119
  %v1122 = vmul.f32 %v1111, %v1120
  %v1123 = vmul.f32 %v1113, %v1121
  %v1124 = vpack.c.bf16 %v1123, %v1122
  %1125 = vrot.lane.b32.xlu0 %v1051, 64
  %v1126 = vpop.permute.xlu0 %1125
  %v1129 = vsel %vm212, %v1124, 0
  %1131 = vmatprep.subr.bf16.mxu0 0
  %1132 = vmatpush1.bf16.msra.mxu0 %v1126
  %1133 = vmatprep.subr.bf16.mxu0 0
  %1134 = vmatpush1.bf16.msra.mxu0 0
  %1135 = vmatprep.subr.bf16.mxu0 0
  %1136 = vmatpush1.bf16.msra.mxu0 0
  %1137 = vmatprep.subr.bf16.mxu0 0
  %1138 = vmatpush1.bf16.msra.mxu0 0
  %1139 = vmatprep.subr.bf16.mxu0 0
  %1140 = vmatpush1.bf16.msra.mxu0 0
  %1141 = vmatprep.subr.bf16.mxu0 0
  %1142 = vmatpush1.bf16.msra.mxu0 0
  %1143 = vmatprep.subr.bf16.mxu0 0
  %1144 = vmatpush1.bf16.msra.mxu0 0
  %1145 = vmatprep.subr.bf16.mxu0 0
  %1146 = vmatpush1.bf16.msra.mxu0 0
  %1147 = vmatprep.subr.bf16.mxu0 0
  %1148 = vmatpush1.bf16.msra.mxu0 0
  %1149 = vmatprep.subr.bf16.mxu0 0
  %1150 = vmatpush1.bf16.msra.mxu0 0
  %1151 = vmatprep.subr.bf16.mxu0 0
  %1152 = vmatpush1.bf16.msra.mxu0 0
  %1153 = vmatprep.subr.bf16.mxu0 0
  %1154 = vmatpush1.bf16.msra.mxu0 0
  %1155 = vmatprep.subr.bf16.mxu0 0
  %1156 = vmatpush1.bf16.msra.mxu0 0
  %1157 = vmatprep.subr.bf16.mxu0 0
  %1158 = vmatpush1.bf16.msra.mxu0 0
  %1159 = vmatprep.subr.bf16.mxu0 0
  %1160 = vmatpush1.bf16.msra.mxu0 0
  %1161 = vmatprep.subr.bf16.mxu0 0
  %1162 = vmatpush1.bf16.msra.mxu0 0
  %1163 = vmatprep.mubr.bf16.mxu0 0
  %1164 = vmatmul.mubr.bf16.gmra.mrb[0].mxu0 %v1129
  %v1165 = vpop.f32.mrb[0].mxu0
  %v1166 = vadd.f32 0.0, %v1165
  %v1167 = vpop.f32.mrb[0].mxu0
  %v1168 = vpop.f32.mrb[0].mxu0
  %v1169 = vadd.f32 0.0, %v1168
  %v1170 = vpop.f32.mrb[0].mxu0
  %1171 = vdwg.mxu0
  %1172 = vrot.lane.b32.xlu0 %v1051, 120
  %v1173 = vpop.permute.xlu0 %1172
  %1174 = vrot.lane.b32.xlu0 %v1051, 88
  %v1175 = vpop.permute.xlu0 %1174
  %v1177 = vsel %vm164, %v1173, 0
  %v1180 = vsel %vm164, %v1175, 0
  %1182 = vmatprep.subr.bf16.mxu0 0
  %1183 = vmatpush1.bf16.xpose.msra.mxu0 %v1180
  %1184 = vmatprep.subr.bf16.mxu0 0
  %1185 = vmatpush1.bf16.xpose.msra.mxu0 0
  %1186 = vmatprep.subr.bf16.mxu0 0
  %1187 = vmatpush1.bf16.xpose.msra.mxu0 0
  %1188 = vmatprep.subr.bf16.mxu0 0
  %1189 = vmatpush1.bf16.xpose.msra.mxu0 0
  %1190 = vmatprep.subr.bf16.mxu0 0
  %1191 = vmatpush1.bf16.xpose.msra.mxu0 0
  %1192 = vmatprep.subr.bf16.mxu0 0
  %1193 = vmatpush1.bf16.xpose.msra.mxu0 0
  %1194 = vmatprep.subr.bf16.mxu0 0
  %1195 = vmatpush1.bf16.xpose.msra.mxu0 0
  %1196 = vmatprep.subr.bf16.mxu0 0
  %1197 = vmatpush1.bf16.xpose.msra.mxu0 0
  %1198 = vmatprep.subr.bf16.mxu0 0
  %1199 = vmatpush1.bf16.xpose.msra.mxu0 0
  %1200 = vmatprep.subr.bf16.mxu0 0
  %1201 = vmatpush1.bf16.xpose.msra.mxu0 0
  %1202 = vmatprep.subr.bf16.mxu0 0
  %1203 = vmatpush1.bf16.xpose.msra.mxu0 0
  %1204 = vmatprep.subr.bf16.mxu0 0
  %1205 = vmatpush1.bf16.xpose.msra.mxu0 0
  %1206 = vmatprep.subr.bf16.mxu0 0
  %1207 = vmatpush1.bf16.xpose.msra.mxu0 0
  %1208 = vmatprep.subr.bf16.mxu0 0
  %1209 = vmatpush1.bf16.xpose.msra.mxu0 0
  %1210 = vmatprep.subr.bf16.mxu0 0
  %1211 = vmatpush1.bf16.xpose.msra.mxu0 0
  %1212 = vmatprep.subr.bf16.mxu0 0
  %1213 = vmatpush1.bf16.xpose.msra.mxu0 0
  %1214 = vmatprep.mubr.bf16.mxu0 0
  %1215 = vmatmul.mubr.bf16.gmra.mrb[0].mxu0 %v1177
  %v1216 = vpop.f32.mrb[0].mxu0
  %v1217 = vadd.f32 %v51, %v1216
  %v1218 = vpop.f32.mrb[0].mxu0
  %v1219 = vpop.f32.mrb[0].mxu0
  %v1220 = vadd.f32 %v52, %v1219
  %v1221 = vpop.f32.mrb[0].mxu0
  %1222 = vdwg.mxu0
  %v1223 = vsel %vm212, %v1217, -inf
  %1224 = vmax.xlane.f32.xlu0 %v1223
  %v1225 = vpop.xlane.xlu0 %1224
  %v1226 = vsel %vm212, %v1220, -inf
  %1227 = vmax.xlane.f32.xlu0 %v1226
  %v1228 = vpop.xlane.xlu0 %1227
  %v1229 = vsub.f32 %v1217, %v1225
  %v1230 = vsub.f32 %v1220, %v1228
  %v1231 = vmul.f32 %v1229, 1.442695
  %v1232 = vpow.pop %v1231
  %v1233 = vmul.f32 %v1230, 1.442695
  %v1234 = vpow.pop %v1233
  %v1235 = vsel %vm212, %v1232, 0.0
  %1236 = vadd.xlane.f32.xlu0 %v1235
  %v1237 = vpop.xlane.xlu0 %1236
  %v1238 = vsel %vm212, %v1234, 0.0
  %1239 = vadd.xlane.f32.xlu0 %v1238
  %v1240 = vpop.xlane.xlu0 %1239
  %v1241 = vrcp.pop %v1237
  %v1242 = vrcp.pop %v1240
  %v1243 = vmul.f32 %v1232, %v1241
  %v1244 = vmul.f32 %v1234, %v1242
  %v1245 = vpack.c.bf16 %v1244, %v1243
  %1246 = vrot.lane.b32.xlu0 %v1051, 56
  %v1247 = vpop.permute.xlu0 %1246
  %v1250 = vsel %vm212, %v1245, 0
  %1252 = vmatprep.subr.bf16.mxu0 0
  %1253 = vmatpush1.bf16.msra.mxu0 %v1247
  %1254 = vmatprep.subr.bf16.mxu0 0
  %1255 = vmatpush1.bf16.msra.mxu0 0
  %1256 = vmatprep.subr.bf16.mxu0 0
  %1257 = vmatpush1.bf16.msra.mxu0 0
  %1258 = vmatprep.subr.bf16.mxu0 0
  %1259 = vmatpush1.bf16.msra.mxu0 0
  %1260 = vmatprep.subr.bf16.mxu0 0
  %1261 = vmatpush1.bf16.msra.mxu0 0
  %1262 = vmatprep.subr.bf16.mxu0 0
  %1263 = vmatpush1.bf16.msra.mxu0 0
  %1264 = vmatprep.subr.bf16.mxu0 0
  %1265 = vmatpush1.bf16.msra.mxu0 0
  %1266 = vmatprep.subr.bf16.mxu0 0
  %1267 = vmatpush1.bf16.msra.mxu0 0
  %1268 = vmatprep.subr.bf16.mxu0 0
  %1269 = vmatpush1.bf16.msra.mxu0 0
  %1270 = vmatprep.subr.bf16.mxu0 0
  %1271 = vmatpush1.bf16.msra.mxu0 0
  %1272 = vmatprep.subr.bf16.mxu0 0
  %1273 = vmatpush1.bf16.msra.mxu0 0
  %1274 = vmatprep.subr.bf16.mxu0 0
  %1275 = vmatpush1.bf16.msra.mxu0 0
  %1276 = vmatprep.subr.bf16.mxu0 0
  %1277 = vmatpush1.bf16.msra.mxu0 0
  %1278 = vmatprep.subr.bf16.mxu0 0
  %1279 = vmatpush1.bf16.msra.mxu0 0
  %1280 = vmatprep.subr.bf16.mxu0 0
  %1281 = vmatpush1.bf16.msra.mxu0 0
  %1282 = vmatprep.subr.bf16.mxu0 0
  %1283 = vmatpush1.bf16.msra.mxu0 0
  %1284 = vmatprep.mubr.bf16.mxu0 0
  %1285 = vmatmul.mubr.bf16.gmra.mrb[0].mxu0 %v1250
  %v1286 = vpop.f32.mrb[0].mxu0
  %v1287 = vadd.f32 0.0, %v1286
  %v1288 = vpop.f32.mrb[0].mxu0
  %v1289 = vpop.f32.mrb[0].mxu0
  %v1290 = vadd.f32 0.0, %v1289
  %v1291 = vpop.f32.mrb[0].mxu0
  %1292 = vdwg.mxu0
  %1293 = vrot.lane.b32.xlu0 %v1051, 112
  %v1294 = vpop.permute.xlu0 %1293
  %1295 = vrot.lane.b32.xlu0 %v1051, 80
  %v1296 = vpop.permute.xlu0 %1295
  %v1298 = vsel %vm164, %v1294, 0
  %v1301 = vsel %vm164, %v1296, 0
  %1303 = vmatprep.subr.bf16.mxu0 0
  %1304 = vmatpush1.bf16.xpose.msra.mxu0 %v1301
  %1305 = vmatprep.subr.bf16.mxu0 0
  %1306 = vmatpush1.bf16.xpose.msra.mxu0 0
  %1307 = vmatprep.subr.bf16.mxu0 0
  %1308 = vmatpush1.bf16.xpose.msra.mxu0 0
  %1309 = vmatprep.subr.bf16.mxu0 0
  %1310 = vmatpush1.bf16.xpose.msra.mxu0 0
  %1311 = vmatprep.subr.bf16.mxu0 0
  %1312 = vmatpush1.bf16.xpose.msra.mxu0 0
  %1313 = vmatprep.subr.bf16.mxu0 0
  %1314 = vmatpush1.bf16.xpose.msra.mxu0 0
  %1315 = vmatprep.subr.bf16.mxu0 0
  %1316 = vmatpush1.bf16.xpose.msra.mxu0 0
  %1317 = vmatprep.subr.bf16.mxu0 0
  %1318 = vmatpush1.bf16.xpose.msra.mxu0 0
  %1319 = vmatprep.subr.bf16.mxu0 0
  %1320 = vmatpush1.bf16.xpose.msra.mxu0 0
  %1321 = vmatprep.subr.bf16.mxu0 0
  %1322 = vmatpush1.bf16.xpose.msra.mxu0 0
  %1323 = vmatprep.subr.bf16.mxu0 0
  %1324 = vmatpush1.bf16.xpose.msra.mxu0 0
  %1325 = vmatprep.subr.bf16.mxu0 0
  %1326 = vmatpush1.bf16.xpose.msra.mxu0 0
  %1327 = vmatprep.subr.bf16.mxu0 0
  %1328 = vmatpush1.bf16.xpose.msra.mxu0 0
  %1329 = vmatprep.subr.bf16.mxu0 0
  %1330 = vmatpush1.bf16.xpose.msra.mxu0 0
  %1331 = vmatprep.subr.bf16.mxu0 0
  %1332 = vmatpush1.bf16.xpose.msra.mxu0 0
  %1333 = vmatprep.subr.bf16.mxu0 0
  %1334 = vmatpush1.bf16.xpose.msra.mxu0 0
  %1335 = vmatprep.mubr.bf16.mxu0 0
  %1336 = vmatmul.mubr.bf16.gmra.mrb[0].mxu0 %v1298
  %v1337 = vpop.f32.mrb[0].mxu0
  %v1338 = vadd.f32 %v51, %v1337
  %v1339 = vpop.f32.mrb[0].mxu0
  %v1340 = vpop.f32.mrb[0].mxu0
  %v1341 = vadd.f32 %v52, %v1340
  %v1342 = vpop.f32.mrb[0].mxu0
  %1343 = vdwg.mxu0
  %v1344 = vsel %vm212, %v1338, -inf
  %1345 = vmax.xlane.f32.xlu0 %v1344
  %v1346 = vpop.xlane.xlu0 %1345
  %v1347 = vsel %vm212, %v1341, -inf
  %1348 = vmax.xlane.f32.xlu0 %v1347
  %v1349 = vpop.xlane.xlu0 %1348
  %v1350 = vsub.f32 %v1338, %v1346
  %v1351 = vsub.f32 %v1341, %v1349
  %v1352 = vmul.f32 %v1350, 1.442695
  %v1353 = vpow.pop %v1352
  %v1354 = vmul.f32 %v1351, 1.442695
  %v1355 = vpow.pop %v1354
  %v1356 = vsel %vm212, %v1353, 0.0
  %1357 = vadd.xlane.f32.xlu0 %v1356
  %v1358 = vpop.xlane.xlu0 %1357
  %v1359 = vsel %vm212, %v1355, 0.0
  %1360 = vadd.xlane.f32.xlu0 %v1359
  %v1361 = vpop.xlane.xlu0 %1360
  %v1362 = vrcp.pop %v1358
  %v1363 = vrcp.pop %v1361
  %v1364 = vmul.f32 %v1353, %v1362
  %v1365 = vmul.f32 %v1355, %v1363
  %v1366 = vpack.c.bf16 %v1365, %v1364
  %1367 = vrot.lane.b32.xlu0 %v1051, 48
  %v1368 = vpop.permute.xlu0 %1367
  %v1371 = vsel %vm212, %v1366, 0
  %1373 = vmatprep.subr.bf16.mxu0 0
  %1374 = vmatpush1.bf16.msra.mxu0 %v1368
  %1375 = vmatprep.subr.bf16.mxu0 0
  %1376 = vmatpush1.bf16.msra.mxu0 0
  %1377 = vmatprep.subr.bf16.mxu0 0
  %1378 = vmatpush1.bf16.msra.mxu0 0
  %1379 = vmatprep.subr.bf16.mxu0 0
  %1380 = vmatpush1.bf16.msra.mxu0 0
  %1381 = vmatprep.subr.bf16.mxu0 0
  %1382 = vmatpush1.bf16.msra.mxu0 0
  %1383 = vmatprep.subr.bf16.mxu0 0
  %1384 = vmatpush1.bf16.msra.mxu0 0
  %1385 = vmatprep.subr.bf16.mxu0 0
  %1386 = vmatpush1.bf16.msra.mxu0 0
  %1387 = vmatprep.subr.bf16.mxu0 0
  %1388 = vmatpush1.bf16.msra.mxu0 0
  %1389 = vmatprep.subr.bf16.mxu0 0
  %1390 = vmatpush1.bf16.msra.mxu0 0
  %1391 = vmatprep.subr.bf16.mxu0 0
  %1392 = vmatpush1.bf16.msra.mxu0 0
  %1393 = vmatprep.subr.bf16.mxu0 0
  %1394 = vmatpush1.bf16.msra.mxu0 0
  %1395 = vmatprep.subr.bf16.mxu0 0
  %1396 = vmatpush1.bf16.msra.mxu0 0
  %1397 = vmatprep.subr.bf16.mxu0 0
  %1398 = vmatpush1.bf16.msra.mxu0 0
  %1399 = vmatprep.subr.bf16.mxu0 0
  %1400 = vmatpush1.bf16.msra.mxu0 0
  %1401 = vmatprep.subr.bf16.mxu0 0
  %1402 = vmatpush1.bf16.msra.mxu0 0
  %1403 = vmatprep.subr.bf16.mxu0 0
  %1404 = vmatpush1.bf16.msra.mxu0 0
  %1405 = vmatprep.mubr.bf16.mxu0 0
  %1406 = vmatmul.mubr.bf16.gmra.mrb[0].mxu0 %v1371
  %v1407 = vpop.f32.mrb[0].mxu0
  %v1408 = vadd.f32 0.0, %v1407
  %v1409 = vpop.f32.mrb[0].mxu0
  %v1410 = vpop.f32.mrb[0].mxu0
  %v1411 = vadd.f32 0.0, %v1410
  %v1412 = vpop.f32.mrb[0].mxu0
  %1413 = vdwg.mxu0
  %1414 = vrot.lane.b32.xlu0 %v1051, 104
  %v1415 = vpop.permute.xlu0 %1414
  %1416 = vrot.lane.b32.xlu0 %v1051, 72
  %v1417 = vpop.permute.xlu0 %1416
  %v1419 = vsel %vm164, %v1415, 0
  %v1422 = vsel %vm164, %v1417, 0
  %1424 = vmatprep.subr.bf16.mxu0 0
  %1425 = vmatpush1.bf16.xpose.msra.mxu0 %v1422
  %1426 = vmatprep.subr.bf16.mxu0 0
  %1427 = vmatpush1.bf16.xpose.msra.mxu0 0
  %1428 = vmatprep.subr.bf16.mxu0 0
  %1429 = vmatpush1.bf16.xpose.msra.mxu0 0
  %1430 = vmatprep.subr.bf16.mxu0 0
  %1431 = vmatpush1.bf16.xpose.msra.mxu0 0
  %1432 = vmatprep.subr.bf16.mxu0 0
  %1433 = vmatpush1.bf16.xpose.msra.mxu0 0
  %1434 = vmatprep.subr.bf16.mxu0 0
  %1435 = vmatpush1.bf16.xpose.msra.mxu0 0
  %1436 = vmatprep.subr.bf16.mxu0 0
  %1437 = vmatpush1.bf16.xpose.msra.mxu0 0
  %1438 = vmatprep.subr.bf16.mxu0 0
  %1439 = vmatpush1.bf16.xpose.msra.mxu0 0
  %1440 = vmatprep.subr.bf16.mxu0 0
  %1441 = vmatpush1.bf16.xpose.msra.mxu0 0
  %1442 = vmatprep.subr.bf16.mxu0 0
  %1443 = vmatpush1.bf16.xpose.msra.mxu0 0
  %1444 = vmatprep.subr.bf16.mxu0 0
  %1445 = vmatpush1.bf16.xpose.msra.mxu0 0
  %1446 = vmatprep.subr.bf16.mxu0 0
  %1447 = vmatpush1.bf16.xpose.msra.mxu0 0
  %1448 = vmatprep.subr.bf16.mxu0 0
  %1449 = vmatpush1.bf16.xpose.msra.mxu0 0
  %1450 = vmatprep.subr.bf16.mxu0 0
  %1451 = vmatpush1.bf16.xpose.msra.mxu0 0
  %1452 = vmatprep.subr.bf16.mxu0 0
  %1453 = vmatpush1.bf16.xpose.msra.mxu0 0
  %1454 = vmatprep.subr.bf16.mxu0 0
  %1455 = vmatpush1.bf16.xpose.msra.mxu0 0
  %1456 = vmatprep.mubr.bf16.mxu0 0
  %1457 = vmatmul.mubr.bf16.gmra.mrb[0].mxu0 %v1419
  %v1458 = vpop.f32.mrb[0].mxu0
  %v1459 = vadd.f32 %v51, %v1458
  %v1460 = vpop.f32.mrb[0].mxu0
  %v1461 = vpop.f32.mrb[0].mxu0
  %v1462 = vadd.f32 %v52, %v1461
  %v1463 = vpop.f32.mrb[0].mxu0
  %1464 = vdwg.mxu0
  %v1465 = vsel %vm212, %v1459, -inf
  %1466 = vmax.xlane.f32.xlu0 %v1465
  %v1467 = vpop.xlane.xlu0 %1466
  %v1468 = vsel %vm212, %v1462, -inf
  %1469 = vmax.xlane.f32.xlu0 %v1468
  %v1470 = vpop.xlane.xlu0 %1469
  %v1471 = vsub.f32 %v1459, %v1467
  %v1472 = vsub.f32 %v1462, %v1470
  %v1473 = vmul.f32 %v1471, 1.442695
  %v1474 = vpow.pop %v1473
  %v1475 = vmul.f32 %v1472, 1.442695
  %v1476 = vpow.pop %v1475
  %v1477 = vsel %vm212, %v1474, 0.0
  %1478 = vadd.xlane.f32.xlu0 %v1477
  %v1479 = vpop.xlane.xlu0 %1478
  %v1480 = vsel %vm212, %v1476, 0.0
  %1481 = vadd.xlane.f32.xlu0 %v1480
  %v1482 = vpop.xlane.xlu0 %1481
  %v1483 = vrcp.pop %v1479
  %v1484 = vrcp.pop %v1482
  %v1485 = vmul.f32 %v1474, %v1483
  %v1486 = vmul.f32 %v1476, %v1484
  %v1487 = vpack.c.bf16 %v1486, %v1485
  %1488 = vrot.lane.b32.xlu0 %v1051, 40
  %v1489 = vpop.permute.xlu0 %1488
  %v1492 = vsel %vm212, %v1487, 0
  %1494 = vmatprep.subr.bf16.mxu0 0
  %1495 = vmatpush1.bf16.msra.mxu0 %v1489
  %1496 = vmatprep.subr.bf16.mxu0 0
  %1497 = vmatpush1.bf16.msra.mxu0 0
  %1498 = vmatprep.subr.bf16.mxu0 0
  %1499 = vmatpush1.bf16.msra.mxu0 0
  %1500 = vmatprep.subr.bf16.mxu0 0
  %1501 = vmatpush1.bf16.msra.mxu0 0
  %1502 = vmatprep.subr.bf16.mxu0 0
  %1503 = vmatpush1.bf16.msra.mxu0 0
  %1504 = vmatprep.subr.bf16.mxu0 0
  %1505 = vmatpush1.bf16.msra.mxu0 0
  %1506 = vmatprep.subr.bf16.mxu0 0
  %1507 = vmatpush1.bf16.msra.mxu0 0
  %1508 = vmatprep.subr.bf16.mxu0 0
  %1509 = vmatpush1.bf16.msra.mxu0 0
  %1510 = vmatprep.subr.bf16.mxu0 0
  %1511 = vmatpush1.bf16.msra.mxu0 0
  %1512 = vmatprep.subr.bf16.mxu0 0
  %1513 = vmatpush1.bf16.msra.mxu0 0
  %1514 = vmatprep.subr.bf16.mxu0 0
  %1515 = vmatpush1.bf16.msra.mxu0 0
  %1516 = vmatprep.subr.bf16.mxu0 0
  %1517 = vmatpush1.bf16.msra.mxu0 0
  %1518 = vmatprep.subr.bf16.mxu0 0
  %1519 = vmatpush1.bf16.msra.mxu0 0
  %1520 = vmatprep.subr.bf16.mxu0 0
  %1521 = vmatpush1.bf16.msra.mxu0 0
  %1522 = vmatprep.subr.bf16.mxu0 0
  %1523 = vmatpush1.bf16.msra.mxu0 0
  %1524 = vmatprep.subr.bf16.mxu0 0
  %1525 = vmatpush1.bf16.msra.mxu0 0
  %1526 = vmatprep.mubr.bf16.mxu0 0
  %1527 = vmatmul.mubr.bf16.gmra.mrb[0].mxu0 %v1492
  %v1528 = vpop.f32.mrb[0].mxu0
  %v1529 = vadd.f32 0.0, %v1528
  %v1530 = vpop.f32.mrb[0].mxu0
  %v1531 = vpop.f32.mrb[0].mxu0
  %v1532 = vadd.f32 0.0, %v1531
  %v1533 = vpop.f32.mrb[0].mxu0
  %1534 = vdwg.mxu0
  %1537 = vrot.lane.b32.xlu0 %v1287, 8
  %v1538 = vpop.permute.xlu0 %1537
  %1539 = vrot.lane.b32.xlu0 %v1290, 8
  %v1540 = vpop.permute.xlu0 %1539
  %1545 = vrot.lane.b32.xlu0 %v1408, 16
  %v1546 = vpop.permute.xlu0 %1545
  %1547 = vrot.lane.b32.xlu0 %v1411, 16
  %v1548 = vpop.permute.xlu0 %1547
  %1553 = vrot.lane.b32.xlu0 %v1529, 24
  %v1554 = vpop.permute.xlu0 %1553
  %1555 = vrot.lane.b32.xlu0 %v1532, 24
  %v1556 = vpop.permute.xlu0 %1555
  %v1559 = vsel %vm164, %v1166, %v1538
  %v1560 = vsel %vm164, %v1169, %v1540
  %v1561 = vsel %vm212, %v1559, %v1546
  %v1562 = vsel %vm212, %v1560, %v1548
  %v1563 = vsel %vm674, %v1561, %v1554
  %v1564 = vsel %vm674, %v1562, %v1556
  %v1565 = vpack.c.bf16 %v1564, %v1563
  %s1566 = scalar_lea.vmem %s2, 16
  %v1567 = vld [vmem:[%s1566] sm:$0xf]
  %v1568 = vld [vmem:[%s1566 + $0x4] sm:$0xf]
  %v1569 = vld [vmem:[%s1566 + $0x8] sm:$0xf]
  %v1570 = vld [vmem:[%s1566 + $0xc] sm:$0xf]
  %v1575 = vunpack.c.l.b16 %v1567
  %v1576 = vunpack.c.l.b16 %v1568
  %v1577 = vunpack.c.l.b16 %v1569
  %v1578 = vunpack.c.l.b16 %v1570
  %v1579 = vpack.c.b16 %v1576, %v1575
  %v1580 = vpack.c.b16 %v1578, %v1577
  %v1584 = vsel %vm55, %v1565, 0
  %1586 = vmatprep.subr.bf16.mxu0 0
  %1587 = vmatpush1.bf16.msra.mxu0 %v1579
  %1588 = vmatprep.subr.bf16.mxu0 0
  %1589 = vmatpush1.bf16.msra.mxu0 %v1580
  %1590 = vmatprep.subr.bf16.mxu0 0
  %1591 = vmatpush1.bf16.msra.mxu0 0
  %1592 = vmatprep.subr.bf16.mxu0 0
  %1593 = vmatpush1.bf16.msra.mxu0 0
  %1594 = vmatprep.subr.bf16.mxu0 0
  %1595 = vmatpush1.bf16.msra.mxu0 0
  %1596 = vmatprep.subr.bf16.mxu0 0
  %1597 = vmatpush1.bf16.msra.mxu0 0
  %1598 = vmatprep.subr.bf16.mxu0 0
  %1599 = vmatpush1.bf16.msra.mxu0 0
  %1600 = vmatprep.subr.bf16.mxu0 0
  %1601 = vmatpush1.bf16.msra.mxu0 0
  %1602 = vmatprep.subr.bf16.mxu0 0
  %1603 = vmatpush1.bf16.msra.mxu0 0
  %1604 = vmatprep.subr.bf16.mxu0 0
  %1605 = vmatpush1.bf16.msra.mxu0 0
  %1606 = vmatprep.subr.bf16.mxu0 0
  %1607 = vmatpush1.bf16.msra.mxu0 0
  %1608 = vmatprep.subr.bf16.mxu0 0
  %1609 = vmatpush1.bf16.msra.mxu0 0
  %1610 = vmatprep.subr.bf16.mxu0 0
  %1611 = vmatpush1.bf16.msra.mxu0 0
  %1612 = vmatprep.subr.bf16.mxu0 0
  %1613 = vmatpush1.bf16.msra.mxu0 0
  %1614 = vmatprep.subr.bf16.mxu0 0
  %1615 = vmatpush1.bf16.msra.mxu0 0
  %1616 = vmatprep.subr.bf16.mxu0 0
  %1617 = vmatpush1.bf16.msra.mxu0 0
  %1618 = vmatprep.mubr.bf16.mxu0 0
  %1619 = vmatmul.mubr.bf16.gmra.mrb[0].mxu0 %v1584
  %v1620 = vpop.f32.mrb[0].mxu0
  %v1621 = vadd.f32 0.0, %v1620
  %v1622 = vpop.f32.mrb[0].mxu0
  %v1623 = vpop.f32.mrb[0].mxu0
  %v1624 = vadd.f32 0.0, %v1623
  %v1625 = vpop.f32.mrb[0].mxu0
  %1626 = vdwg.mxu0
  %v1627 = vadd.f32 %v941, %v1621
  %v1628 = vadd.f32 %v942, %v1624
  %s1629 = scalar_lea.vmem %s7, 1
  %v1630 = vld [vmem:[%s1629] sm:$0x1]
  %s1631 = scalar_lea.vmem %s8, 1
  %v1632 = vld [vmem:[%s1631] sm:$0x1]
  %v1633 = vsel %vm55, %v1627, 0.0
  %1634 = vadd.xlane.f32.xlu0 %v1633
  %v1635 = vpop.xlane.xlu0 %1634
  %v1636 = vsel %vm55, %v1628, 0.0
  %1637 = vadd.xlane.f32.xlu0 %v1636
  %v1638 = vpop.xlane.xlu0 %1637
  %v1639 = vmul.f32 %v1635, %v62
  %v1640 = vmul.f32 %v1638, %v62
  %v1641 = vsub.f32 %v1627, %v1639
  %v1642 = vsub.f32 %v1628, %v1640
  %v1643 = vmul.f32 %v1641, %v1641
  %v1644 = vmul.f32 %v1642, %v1642
  %v1645 = vsel %vm55, %v1643, 0.0
  %1646 = vadd.xlane.f32.xlu0 %v1645
  %v1647 = vpop.xlane.xlu0 %1646
  %v1648 = vsel %vm55, %v1644, 0.0
  %1649 = vadd.xlane.f32.xlu0 %v1648
  %v1650 = vpop.xlane.xlu0 %1649
  %v1651 = vmul.f32 %v1647, %v62
  %v1652 = vmul.f32 %v1650, %v62
  %v1653 = vadd.f32 %v1651, 1e-05
  %v1654 = vadd.f32 %v1652, 1e-05
  %v1655 = vrsqrt.pop %v1653
  %v1656 = vrsqrt.pop %v1654
  %v1657 = vmul.f32 %v1641, %v1655
  %v1658 = vmul.f32 %v1642, %v1656
  %v1660 = vlaneseq
  %v1661 = vshrl.u32 %v1660, 7
  %v1662 = vsub.s32 0, %v1661
  %v1663 = vrot.slane %v1630, %v1662
  %v1665 = vmul.f32 %v1657, %v1663
  %v1666 = vmul.f32 %v1658, %v1663
  %v1668 = vlaneseq
  %v1669 = vshrl.u32 %v1668, 7
  %v1670 = vsub.s32 0, %v1669
  %v1671 = vrot.slane %v1632, %v1670
  %v1673 = vadd.f32 %v1665, %v1671
  %v1674 = vadd.f32 %v1666, %v1671
  %v1675 = vpack.c.bf16 %v1674, %v1673
  %s1676 = scalar_lea.vmem %s3, 16
  %v1677 = vld [vmem:[%s1676] sm:$0xf]
  %v1678 = vld [vmem:[%s1676 + $0x4] sm:$0xf]
  %v1679 = vld [vmem:[%s1676 + $0x8] sm:$0xf]
  %v1680 = vld [vmem:[%s1676 + $0xc] sm:$0xf]
  %v1685 = vunpack.c.l.b16 %v1677
  %v1686 = vunpack.c.l.b16 %v1678
  %v1687 = vunpack.c.l.b16 %v1679
  %v1688 = vunpack.c.l.b16 %v1680
  %v1689 = vpack.c.b16 %v1686, %v1685
  %v1690 = vpack.c.b16 %v1688, %v1687
  %v1694 = vsel %vm55, %v1675, 0
  %1696 = vmatprep.subr.bf16.mxu0 0
  %1697 = vmatpush1.bf16.msra.mxu0 %v1689
  %1698 = vmatprep.subr.bf16.mxu0 0
  %1699 = vmatpush1.bf16.msra.mxu0 %v1690
  %1700 = vmatprep.subr.bf16.mxu0 0
  %1701 = vmatpush1.bf16.msra.mxu0 0
  %1702 = vmatprep.subr.bf16.mxu0 0
  %1703 = vmatpush1.bf16.msra.mxu0 0
  %1704 = vmatprep.subr.bf16.mxu0 0
  %1705 = vmatpush1.bf16.msra.mxu0 0
  %1706 = vmatprep.subr.bf16.mxu0 0
  %1707 = vmatpush1.bf16.msra.mxu0 0
  %1708 = vmatprep.subr.bf16.mxu0 0
  %1709 = vmatpush1.bf16.msra.mxu0 0
  %1710 = vmatprep.subr.bf16.mxu0 0
  %1711 = vmatpush1.bf16.msra.mxu0 0
  %1712 = vmatprep.subr.bf16.mxu0 0
  %1713 = vmatpush1.bf16.msra.mxu0 0
  %1714 = vmatprep.subr.bf16.mxu0 0
  %1715 = vmatpush1.bf16.msra.mxu0 0
  %1716 = vmatprep.subr.bf16.mxu0 0
  %1717 = vmatpush1.bf16.msra.mxu0 0
  %1718 = vmatprep.subr.bf16.mxu0 0
  %1719 = vmatpush1.bf16.msra.mxu0 0
  %1720 = vmatprep.subr.bf16.mxu0 0
  %1721 = vmatpush1.bf16.msra.mxu0 0
  %1722 = vmatprep.subr.bf16.mxu0 0
  %1723 = vmatpush1.bf16.msra.mxu0 0
  %1724 = vmatprep.subr.bf16.mxu0 0
  %1725 = vmatpush1.bf16.msra.mxu0 0
  %1726 = vmatprep.subr.bf16.mxu0 0
  %1727 = vmatpush1.bf16.msra.mxu0 0
  %1728 = vmatprep.mubr.bf16.mxu0 0
  %1729 = vmatmul.mubr.bf16.gmra.mrb[0].mxu0 %v1694
  %v1730 = vpop.f32.mrb[0].mxu0
  %v1731 = vadd.f32 0.0, %v1730
  %v1732 = vpop.f32.mrb[0].mxu0
  %v1733 = vpop.f32.mrb[0].mxu0
  %v1734 = vadd.f32 0.0, %v1733
  %v1735 = vpop.f32.mrb[0].mxu0
  %1736 = vdwg.mxu0
  %v1737 = vmul.f32 %v1731, 0.5
  %v1738 = vmul.f32 %v1734, 0.5
  %v1739 = vmul.f32 %v1731, 0.044715
  %v1740 = vmul.f32 %v1734, 0.044715
  %v1741 = vmul.f32 %v1739, %v1731
  %v1742 = vmul.f32 %v1740, %v1734
  %v1743 = vmul.f32 %v1741, %v1731
  %v1744 = vmul.f32 %v1742, %v1734
  %v1745 = vadd.f32 %v1731, %v1743
  %v1746 = vadd.f32 %v1734, %v1744
  %v1747 = vmul.f32 %v1745, 0.7978846
  %v1748 = vmul.f32 %v1746, 0.7978846
  %v1749 = vtanh.pop %v1747
  %v1750 = vtanh.pop %v1748
  %v1751 = vadd.f32 %v1749, 1.0
  %v1752 = vadd.f32 %v1750, 1.0
  %v1753 = vmul.f32 %v1737, %v1751
  %v1754 = vmul.f32 %v1738, %v1752
  %v1755 = vpack.c.bf16 %v1754, %v1753
  %s1756 = scalar_lea.vmem %s4, 32
  %v1757 = vld [vmem:[%s1756] sm:$0xf]
  %v1758 = vld [vmem:[%s1756 + $0x4] sm:$0xf]
  %v1759 = vld [vmem:[%s1756 + $0x8] sm:$0xf]
  %v1760 = vld [vmem:[%s1756 + $0xc] sm:$0xf]
  %v1761 = vld [vmem:[%s1756 + $0x10] sm:$0xf]
  %v1762 = vld [vmem:[%s1756 + $0x14] sm:$0xf]
  %v1763 = vld [vmem:[%s1756 + $0x18] sm:$0xf]
  %v1764 = vld [vmem:[%s1756 + $0x1c] sm:$0xf]
  %v1773 = vunpack.c.l.b16 %v1757
  %v1774 = vunpack.c.l.b16 %v1758
  %v1775 = vunpack.c.l.b16 %v1759
  %v1776 = vunpack.c.l.b16 %v1760
  %v1777 = vunpack.c.l.b16 %v1761
  %v1778 = vunpack.c.l.b16 %v1762
  %v1779 = vunpack.c.l.b16 %v1763
  %v1780 = vunpack.c.l.b16 %v1764
  %v1781 = vpack.c.b16 %v1774, %v1773
  %v1782 = vpack.c.b16 %v1776, %v1775
  %v1783 = vpack.c.b16 %v1778, %v1777
  %v1784 = vpack.c.b16 %v1780, %v1779
  %v1790 = vsel %vm896, %v1755, 0
  %1792 = vmatprep.subr.bf16.mxu0 0
  %1793 = vmatpush1.bf16.msra.mxu0 %v1781
  %1794 = vmatprep.subr.bf16.mxu0 0
  %1795 = vmatpush1.bf16.msra.mxu0 %v1782
  %1796 = vmatprep.subr.bf16.mxu0 0
  %1797 = vmatpush1.bf16.msra.mxu0 %v1783
  %1798 = vmatprep.subr.bf16.mxu0 0
  %1799 = vmatpush1.bf16.msra.mxu0 %v1784
  %1800 = vmatprep.subr.bf16.mxu0 0
  %1801 = vmatpush1.bf16.msra.mxu0 0
  %1802 = vmatprep.subr.bf16.mxu0 0
  %1803 = vmatpush1.bf16.msra.mxu0 0
  %1804 = vmatprep.subr.bf16.mxu0 0
  %1805 = vmatpush1.bf16.msra.mxu0 0
  %1806 = vmatprep.subr.bf16.mxu0 0
  %1807 = vmatpush1.bf16.msra.mxu0 0
  %1808 = vmatprep.subr.bf16.mxu0 0
  %1809 = vmatpush1.bf16.msra.mxu0 0
  %1810 = vmatprep.subr.bf16.mxu0 0
  %1811 = vmatpush1.bf16.msra.mxu0 0
  %1812 = vmatprep.subr.bf16.mxu0 0
  %1813 = vmatpush1.bf16.msra.mxu0 0
  %1814 = vmatprep.subr.bf16.mxu0 0
  %1815 = vmatpush1.bf16.msra.mxu0 0
  %1816 = vmatprep.subr.bf16.mxu0 0
  %1817 = vmatpush1.bf16.msra.mxu0 0
  %1818 = vmatprep.subr.bf16.mxu0 0
  %1819 = vmatpush1.bf16.msra.mxu0 0
  %1820 = vmatprep.subr.bf16.mxu0 0
  %1821 = vmatpush1.bf16.msra.mxu0 0
  %1822 = vmatprep.subr.bf16.mxu0 0
  %1823 = vmatpush1.bf16.msra.mxu0 0
  %1824 = vmatprep.mubr.bf16.mxu0 0
  %1825 = vmatmul.mubr.bf16.gmra.mrb[0].mxu0 %v1790
  %v1826 = vpop.f32.mrb[0].mxu0
  %v1827 = vadd.f32 0.0, %v1826
  %v1828 = vpop.f32.mrb[0].mxu0
  %v1829 = vpop.f32.mrb[0].mxu0
  %v1830 = vadd.f32 0.0, %v1829
  %v1831 = vpop.f32.mrb[0].mxu0
  %1832 = vdwg.mxu0
  %v1833 = vadd.f32 %v1627, %v1827
  %v1834 = vadd.f32 %v1628, %v1830
  %v1835 = vld [vmem:[%s9] sm:$0x1]
  %v1836 = vld [vmem:[%s10] sm:$0x1]
  %v1837 = vsel %vm55, %v1833, 0.0
  %1838 = vadd.xlane.f32.xlu0 %v1837
  %v1839 = vpop.xlane.xlu0 %1838
  %v1840 = vsel %vm55, %v1834, 0.0
  %1841 = vadd.xlane.f32.xlu0 %v1840
  %v1842 = vpop.xlane.xlu0 %1841
  %v1843 = vmul.f32 %v1839, %v62
  %v1844 = vmul.f32 %v1842, %v62
  %v1845 = vsub.f32 %v1833, %v1843
  %v1846 = vsub.f32 %v1834, %v1844
  %v1847 = vmul.f32 %v1845, %v1845
  %v1848 = vmul.f32 %v1846, %v1846
  %v1849 = vsel %vm55, %v1847, 0.0
  %1850 = vadd.xlane.f32.xlu0 %v1849
  %v1851 = vpop.xlane.xlu0 %1850
  %v1852 = vsel %vm55, %v1848, 0.0
  %1853 = vadd.xlane.f32.xlu0 %v1852
  %v1854 = vpop.xlane.xlu0 %1853
  %v1855 = vmul.f32 %v1851, %v62
  %v1856 = vmul.f32 %v1854, %v62
  %v1857 = vadd.f32 %v1855, 1e-05
  %v1858 = vadd.f32 %v1856, 1e-05
  %v1859 = vrsqrt.pop %v1857
  %v1860 = vrsqrt.pop %v1858
  %v1861 = vmul.f32 %v1845, %v1859
  %v1862 = vmul.f32 %v1846, %v1860
  %v1864 = vlaneseq
  %v1865 = vshrl.u32 %v1864, 7
  %v1866 = vsub.s32 0, %v1865
  %v1867 = vrot.slane %v1835, %v1866
  %v1869 = vmul.f32 %v1861, %v1867
  %v1870 = vmul.f32 %v1862, %v1867
  %v1872 = vlaneseq
  %v1873 = vshrl.u32 %v1872, 7
  %v1874 = vsub.s32 0, %v1873
  %v1875 = vrot.slane %v1836, %v1874
  %v1877 = vadd.f32 %v1869, %v1875
  %v1878 = vadd.f32 %v1870, %v1875
  %v1879 = vpack.c.bf16 %v1878, %v1877
  %v1880 = vld [vmem:[%s11] sm:$0xf]
  %v1881 = vld [vmem:[%s11 + $0x4] sm:$0xf]
  %v1882 = vld [vmem:[%s11 + $0x8] sm:$0xf]
  %v1883 = vld [vmem:[%s11 + $0xc] sm:$0xf]
  %v1888 = vunpack.c.l.b16 %v1880
  %v1889 = vunpack.c.l.b16 %v1881
  %v1890 = vunpack.c.l.b16 %v1882
  %v1891 = vunpack.c.l.b16 %v1883
  %v1892 = vpack.c.b16 %v1889, %v1888
  %v1893 = vpack.c.b16 %v1891, %v1890
  %v1897 = vsel %vm55, %v1879, 0
  %1899 = vmatprep.subr.bf16.mxu0 0
  %1900 = vmatpush1.bf16.msra.mxu0 %v1892
  %1901 = vmatprep.subr.bf16.mxu0 0
  %1902 = vmatpush1.bf16.msra.mxu0 %v1893
  %1903 = vmatprep.subr.bf16.mxu0 0
  %1904 = vmatpush1.bf16.msra.mxu0 0
  %1905 = vmatprep.subr.bf16.mxu0 0
  %1906 = vmatpush1.bf16.msra.mxu0 0
  %1907 = vmatprep.subr.bf16.mxu0 0
  %1908 = vmatpush1.bf16.msra.mxu0 0
  %1909 = vmatprep.subr.bf16.mxu0 0
  %1910 = vmatpush1.bf16.msra.mxu0 0
  %1911 = vmatprep.subr.bf16.mxu0 0
  %1912 = vmatpush1.bf16.msra.mxu0 0
  %1913 = vmatprep.subr.bf16.mxu0 0
  %1914 = vmatpush1.bf16.msra.mxu0 0
  %1915 = vmatprep.subr.bf16.mxu0 0
  %1916 = vmatpush1.bf16.msra.mxu0 0
  %1917 = vmatprep.subr.bf16.mxu0 0
  %1918 = vmatpush1.bf16.msra.mxu0 0
  %1919 = vmatprep.subr.bf16.mxu0 0
  %1920 = vmatpush1.bf16.msra.mxu0 0
  %1921 = vmatprep.subr.bf16.mxu0 0
  %1922 = vmatpush1.bf16.msra.mxu0 0
  %1923 = vmatprep.subr.bf16.mxu0 0
  %1924 = vmatpush1.bf16.msra.mxu0 0
  %1925 = vmatprep.subr.bf16.mxu0 0
  %1926 = vmatpush1.bf16.msra.mxu0 0
  %1927 = vmatprep.subr.bf16.mxu0 0
  %1928 = vmatpush1.bf16.msra.mxu0 0
  %1929 = vmatprep.subr.bf16.mxu0 0
  %1930 = vmatpush1.bf16.msra.mxu0 0
  %1931 = vmatprep.mubr.bf16.mxu0 0
  %1932 = vmatmul.mubr.bf16.gmra.mrb[0].mxu0 %v1897
  %v1933 = vpop.f32.mrb[0].mxu0
  %v1934 = vadd.f32 0.0, %v1933
  %v1935 = vpop.f32.mrb[0].mxu0
  %v1936 = vpop.f32.mrb[0].mxu0
  %v1937 = vadd.f32 0.0, %v1936
  %v1938 = vpop.f32.mrb[0].mxu0
  %1939 = vdwg.mxu0
  %1940 = vst [vmem:[%s12] sm:$0xff] %v1934
  %1941 = vst [vmem:[%s12 + $0x8] sm:$0xff] %v1937
  // Predicated region
  $region50: #{closed_call.20} parent=0 // pred_check
    _
  $region51: #{closed_call.20} parent=0 // pred_check_branch
    %1943 = sbr.rel (0) target = $region53
  $region52: #{closed_call.20} parent=0 // pred_region
    _
  $region53: #{closed_call.20} parent=0 // pred_fallthru
    _
  // Predicated region
  $region54: #{closed_call.20} parent=0 // pred_check
    _
  $region55: #{closed_call.20} parent=0 // pred_check_branch
    %1945 = sbr.rel (0) target = $region57
  $region56: #{closed_call.20} parent=0 // pred_region
    _
  $region57: #{closed_call.20} parent=0 // pred_fallthru
    _

</llo_original>
